<compile_context>
chip_gen: v7x
topology: tpu7x:2x2x1
jax: 0.10.0
libtpu: 0.0.40
codegen_flags: <defaults>
</compile_context>

<pallas_src>
import functools

import jax
import jax.numpy as jnp
from jax.experimental import pallas as pl
from jax.experimental.pallas import tpu as pltpu

# logical model dims
IN_CHANNELS = 131
OUT_CHANNELS = 64
FP_DIM = 2065
HIDDEN = 128
N_CLASSES = 2

# lane-padded dims (multiples of 128); COUT_PAD stays 128 (review: do not widen)
COUT_PAD = 128
FP_PAD = 2176          # 17 * 128
NCLS_PAD = 128
SUBLANE = 8


def _round_up(v, m):
    return ((v + m - 1) // m) * m


def _pad2d(a, rows, cols):
    a = jnp.asarray(a)
    return jnp.pad(a, ((0, rows - a.shape[0]), (0, cols - a.shape[1])))


def _vmem_budget_bytes():
    """Scoped-VMEM request with headroom for Mosaic internal scratch."""
    try:
        cap = int(pltpu.get_tpu_info().vmem_capacity_bytes)
    except Exception:
        cap = 64 * 1024 * 1024          # conservative (v7x-sized) fallback
    return max(32 * 1024 * 1024, min(cap - 16 * 1024 * 1024, 112 * 1024 * 1024))


def _choose_row_tile(n, g_pad, vmem_budget):
    """Largest A row tile whose double-buffered working set fits the budget."""
    headroom = 6 * 1024 * 1024
    n128 = _round_up(max(n, 1), 128)
    candidates = [t for t in (1024, 512, 256, 128) if t <= n128] or [128]
    for tm in candidates:
        n_pad = _round_up(n, tm)
        resident = (n_pad * COUT_PAD * 2            # XW (bf16, single-buffered)
                    + COUT_PAD * COUT_PAD * 2       # Wconv2 (bf16)
                    + COUT_PAD * 4)                 # bconv1 (f32)
        streamed = 2 * (tm * n_pad * 2              # A row tile (bf16) x2 bufs
                        + g_pad * tm * 4            # PA column tile (f32)
                        + g_pad * COUT_PAD * 4)     # partial-pooled out block
        if resident + streamed + headroom <= vmem_budget:
            return tm
    return 128


# ----------------------------------------------------------------------------
# Kernels
# ----------------------------------------------------------------------------

def _gcn_pool_kernel(a_ref, pa_ref, xw_ref, w2_ref, b1_ref, part_ref):
    # H1 tile = relu(A[tile, :] @ (X W1) + b1).
    # Invariant: padded node rows of A are zero, so their H1 rows equal
    # relu(b1); they are cancelled because the matching PA columns are zero
    # (padded nodes belong to no graph).
    h1 = jnp.dot(a_ref[...], xw_ref[...], preferred_element_type=jnp.float32)
    h1 = jnp.maximum(h1 + b1_ref[...], 0.0)
    # (H1 @ Wconv2) for this tile.
    h1w2 = jnp.dot(h1.astype(jnp.bfloat16), w2_ref[...],
                   preferred_element_type=jnp.float32)
    # Mean-pool folded into the sweep: partial pooled = PA[:, tile] @ (H1 W2).
    part_ref[...] = jnp.dot(pa_ref[...], h1w2,
                            preferred_element_type=jnp.float32
                            ).astype(part_ref.dtype)


def _head_kernel(pooled_ref, fp_ref, wl1a_ref, wl1b_ref, bl1_ref,
                 wl2_ref, bl2_ref, out_ref):
    # linear1 applied without materializing the [G, 64 + 2065] concat.
    h = jnp.dot(pooled_ref[...], wl1a_ref[...],
                preferred_element_type=jnp.float32)
    h = h + jnp.dot(fp_ref[...], wl1b_ref[...],
                    preferred_element_type=jnp.float32)
    h = jnp.maximum(h + bl1_ref[...], 0.0)
    # TODO(synk): nn.Dropout(p=0.5) is identity in eval mode; training-mode
    # stochastic dropout (pltpu.prng_*) intentionally omitted.
    out = jnp.dot(h, wl2_ref[...],
                  preferred_element_type=jnp.float32) + bl2_ref[...]
    out_ref[...] = out.astype(out_ref.dtype)


# ----------------------------------------------------------------------------
# Glue: normalized adjacency + pooling matrix (plain JAX, runs under jit)
# ----------------------------------------------------------------------------

def build_norm_adj(edge_index, num_nodes):
    """Dense D~^{-1/2} (A + I_remaining) D~^{-1/2}, matching PyG gcn_norm with
    add_remaining_self_loops (existing self-loops kept, not doubled)."""
    src = edge_index[0]
    dst = edge_index[1]
    a = jnp.zeros((num_nodes, num_nodes), jnp.float32)
    a = a.at[dst, src].add(1.0)                       # message flows src -> dst
    diag = jnp.diagonal(a)
    a = a + jnp.diag(jnp.where(diag > 0.0, 0.0, 1.0))
    deg = a.sum(axis=1)
    d_inv_sqrt = jnp.where(deg > 0, 1.0 / jnp.sqrt(deg), 0.0)
    return d_inv_sqrt[:, None] * a * d_inv_sqrt[None, :]


def build_pool_matrix(batch_index, num_graphs):
    """P[g, n] = 1/count[g] iff node n belongs to graph g (global mean pool)."""
    onehot = (batch_index[None, :] ==
              jnp.arange(num_graphs)[:, None]).astype(jnp.float32)
    counts = jnp.maximum(onehot.sum(axis=1, keepdims=True), 1.0)
    return onehot / counts


# ----------------------------------------------------------------------------
# Parameters + forward
# ----------------------------------------------------------------------------

def init_params(key):
    ks = jax.random.split(key, 6)

    def glorot(k, shape):
        fan_in, fan_out = shape
        lim = jnp.sqrt(6.0 / (fan_in + fan_out))
        return jax.random.uniform(k, shape, jnp.float32, -lim, lim)

    return {
        "w_conv1": glorot(ks[0], (IN_CHANNELS, OUT_CHANNELS)),
        "b_conv1": jnp.zeros((OUT_CHANNELS,), jnp.float32),
        "w_conv2": glorot(ks[1], (OUT_CHANNELS, OUT_CHANNELS)),
        "b_conv2": jnp.zeros((OUT_CHANNELS,), jnp.float32),
        "w_lin1": glorot(ks[2], (OUT_CHANNELS + FP_DIM, HIDDEN)),
        "b_lin1": jax.random.uniform(ks[3], (HIDDEN,), jnp.float32, -0.01, 0.01),
        "w_lin2": glorot(ks[4], (HIDDEN, N_CLASSES)),
        "b_lin2": jax.random.uniform(ks[5], (N_CLASSES,), jnp.float32, -0.01, 0.01),
    }


@functools.partial(jax.jit, static_argnames=("num_graphs",))
def ptgcn_forward(params, x, edge_index, batch_index, mol_fingerprints, *,
                  num_graphs):
    n = x.shape[0]
    g_pad = _round_up(num_graphs, SUBLANE)
    vmem_budget = _vmem_budget_bytes()
    tm = _choose_row_tile(n, g_pad, vmem_budget)
    n_pad = _round_up(n, tm)
    n_row_tiles = n_pad // tm

    # ---- XLA-side prep (small relative to streaming the N x N adjacency) ----
    # TODO(synk): dense A_hat build is O(N^2); for very large graphs switch to a
    # CSR row-gather GCN kernel via PrefetchScalarGridSpec instead.
    a_hat = _pad2d(build_norm_adj(edge_index, n), n_pad, n_pad)          # f32
    pool = _pad2d(build_pool_matrix(batch_index, num_graphs), g_pad, n_pad)

    # Fold the mean-pool into the row sweep: PA = P @ A (kept f32 for accuracy)
    # so the kernel reads A exactly once.
    pa = pool @ a_hat                                                    # [g_pad, n_pad]
    a_bf16 = a_hat.astype(jnp.bfloat16)

    # XW = X @ Wconv1 hoisted out of the kernel.
    xw = _pad2d(x.astype(jnp.float32) @ params["w_conv1"],
                n_pad, COUT_PAD).astype(jnp.bfloat16)

    w2c = _pad2d(params["w_conv2"], COUT_PAD, COUT_PAD).astype(jnp.bfloat16)
    b1c = _pad2d(params["b_conv1"].reshape(1, -1), 1, COUT_PAD)

    const = lambda r: (0, 0)

    flops = 2 * (n_pad * n_pad * COUT_PAD          # A @ XW
                 + n_pad * COUT_PAD * COUT_PAD     # H1 @ Wconv2
                 + g_pad * n_pad * COUT_PAD)       # PA @ (H1 Wconv2)
    bytes_accessed = int(n_pad * n_pad * 2                 # A (bf16, once)
                         + g_pad * n_pad * 4               # PA
                         + n_pad * COUT_PAD * 2            # XW
                         + COUT_PAD * COUT_PAD * 2         # Wconv2
                         + COUT_PAD * 4                    # bconv1
                         + n_row_tiles * g_pad * COUT_PAD * 4)  # partials out

    partials = pl.pallas_call(
        _gcn_pool_kernel,
        grid=(n_row_tiles,),
        in_specs=[
            pl.BlockSpec((tm, n_pad), lambda r: (r, 0)),       # A row tile
            pl.BlockSpec((g_pad, tm), lambda r: (0, r)),       # PA column tile
            pl.BlockSpec((n_pad, COUT_PAD), const,
                         pipeline_mode=pl.Buffered(1)),        # XW (resident)
            pl.BlockSpec((COUT_PAD, COUT_PAD), const,
                         pipeline_mode=pl.Buffered(1)),        # Wconv2
            pl.BlockSpec((1, COUT_PAD), const,
                         pipeline_mode=pl.Buffered(1)),        # bconv1
        ],
        out_specs=pl.BlockSpec((g_pad, COUT_PAD), lambda r: (r, 0)),
        out_shape=jax.ShapeDtypeStruct((n_row_tiles * g_pad, COUT_PAD),
                                       jnp.float32),
        compiler_params=pltpu.CompilerParams(
            # Row tiles are fully independent (per-tile partial pooled output),
            # so this axis can be sharded across TensorCores on v7x.
            dimension_semantics=("parallel",),
            vmem_limit_bytes=vmem_budget,
        ),
        cost_estimate=pl.CostEstimate(flops=flops, transcendentals=0,
                                      bytes_accessed=bytes_accessed),
    )(a_bf16, pa, xw, w2c, b1c)

    # Tiny epilogue in XLA: reduce per-tile partials and add the conv2 bias
    # once per graph.  P @ (Y + b2) == (P @ A) @ (H1 W2) + rowsum(P) * b2,
    # where rowsum(P) is 1 for non-empty graphs and 0 for padded graph rows.
    b2c = _pad2d(params["b_conv2"].reshape(1, -1), 1, COUT_PAD)
    pooled = (partials.reshape(n_row_tiles, g_pad, COUT_PAD).sum(axis=0)
              + pool.sum(axis=1, keepdims=True) * b2c)

    # ---- MLP head: tiny, fully VMEM-resident, single-step Pallas kernel -----
    fp = _pad2d(mol_fingerprints.reshape(num_graphs, FP_DIM).astype(jnp.float32),
                g_pad, FP_PAD)
    wl1a = _pad2d(params["w_lin1"][:OUT_CHANNELS, :], COUT_PAD, HIDDEN)
    wl1b = _pad2d(params["w_lin1"][OUT_CHANNELS:, :], FP_PAD, HIDDEN)
    bl1 = _pad2d(params["b_lin1"].reshape(1, -1), 1, HIDDEN)
    wl2 = _pad2d(params["w_lin2"], HIDDEN, NCLS_PAD)
    bl2 = _pad2d(params["b_lin2"].reshape(1, -1), 1, NCLS_PAD)

    out_pad = pl.pallas_call(
        _head_kernel,
        out_shape=jax.ShapeDtypeStruct((g_pad, NCLS_PAD), jnp.float32),
    )(pooled, fp, wl1a, wl1b, bl1, wl2, bl2)

    return out_pad[:num_graphs, :N_CLASSES]


# ----------------------------------------------------------------------------
# Pure-JAX reference (f32) for a sanity check
# ----------------------------------------------------------------------------

def ptgcn_reference(params, x, edge_index, batch_index, mol_fingerprints,
                    num_graphs):
    n = x.shape[0]
    a_hat = build_norm_adj(edge_index, n)
    pool = build_pool_matrix(batch_index, num_graphs)
    h1 = jnp.maximum(a_hat @ (x.astype(jnp.float32) @ params["w_conv1"])
                     + params["b_conv1"], 0.0)
    h2 = a_hat @ (h1 @ params["w_conv2"]) + params["b_conv2"]
    pooled = pool @ h2
    z = jnp.concatenate(
        [pooled, mol_fingerprints.reshape(num_graphs, FP_DIM).astype(jnp.float32)],
        axis=1)
    h = jnp.maximum(z @ params["w_lin1"] + params["b_lin1"], 0.0)
    return h @ params["w_lin2"] + params["b_lin2"]


# ----------------------------------------------------------------------------
# Demo
# ----------------------------------------------------------------------------

if __name__ == "__main__":
    key = jax.random.PRNGKey(0)
    k_param, k_x, k_fp, k_e0, _ = jax.random.split(key, 5)

    num_graphs = 2
    nodes_per_graph = 8
    num_nodes = num_graphs * nodes_per_graph
    edges_per_graph = 12

    params = init_params(k_param)

    # Node features [N, 131]
    x = jax.random.normal(k_x, (num_nodes, IN_CHANNELS), jnp.float32)

    # Random intra-graph edges, [2, E]
    srcs, dsts = [], []
    ek = jax.random.split(k_e0, num_graphs)
    for g in range(num_graphs):
        ka, kb = jax.random.split(ek[g])
        s = jax.random.randint(ka, (edges_per_graph,), 0, nodes_per_graph) + g * nodes_per_graph
        d = jax.random.randint(kb, (edges_per_graph,), 0, nodes_per_graph) + g * nodes_per_graph
        srcs.append(s)
        dsts.append(d)
    edge_index = jnp.stack([jnp.concatenate(srcs), jnp.concatenate(dsts)], axis=0)

    # Graph membership per node, [N]
    batch_index = jnp.repeat(jnp.arange(num_graphs), nodes_per_graph)

    # Molecular fingerprints, [G, 2065]
    mol_fingerprints = (
        jax.random.uniform(k_fp, (num_graphs, FP_DIM)) > 0.5
    ).astype(jnp.float32)

    out = ptgcn_forward(params, x, edge_index, batch_index, mol_fingerprints,
                        num_graphs=num_graphs)
    out = jax.block_until_ready(out)

    assert out.shape == (num_graphs, N_CLASSES), out.shape
    assert bool(jnp.all(jnp.isfinite(out)))

    ref = ptgcn_reference(params, x, edge_index, batch_index, mol_fingerprints,
                          num_graphs)
    max_err = float(jnp.max(jnp.abs(out - ref)))
    assert max_err < 0.1, f"max |kernel - reference| = {max_err}"

    print("KERNEL_OK")
</pallas_src>

<mosaic_0001>
module attributes {stable_mosaic.version = 11 : i64} {
  func.func @_gcn_pool_kernel(%arg0: i32, %arg1: memref<128x128xbf16, #tpu.memory_space<vmem>>, %arg2: memref<8x128xf32, #tpu.memory_space<vmem>>, %arg3: memref<128x128xbf16, #tpu.memory_space<vmem>>, %arg4: memref<128x128xbf16, #tpu.memory_space<vmem>>, %arg5: memref<1x128xf32, #tpu.memory_space<vmem>>, %arg6: memref<8x128xf32, #tpu.memory_space<vmem>>) attributes {dimension_semantics = [#tpu.dimension_semantics<parallel>], iteration_bounds = array<i64: 1>, scalar_prefetch = 0 : i64, scratch_operands = 0 : i64, tpu.core_type = #tpu.core_type<tc>, window_params = [{transform_indices = @transform_0, window_bounds = array<i64: 128, 128>}, {transform_indices = @transform_1, window_bounds = array<i64: 8, 128>}, {pipeline_mode = #tpu.pipeline_mode<synchronous>, transform_indices = @transform_2, window_bounds = array<i64: 128, 128>}, {pipeline_mode = #tpu.pipeline_mode<synchronous>, transform_indices = @transform_3, window_bounds = array<i64: 128, 128>}, {pipeline_mode = #tpu.pipeline_mode<synchronous>, transform_indices = @transform_4, window_bounds = array<i64: 1, 128>}, {transform_indices = @transform_5, window_bounds = array<i64: 8, 128>}]} {
    %c0 = arith.constant 0 : index
    %c0_0 = arith.constant 0 : index
    %0 = vector.load %arg1[%c0, %c0_0] : memref<128x128xbf16, #tpu.memory_space<vmem>>, vector<128x128xbf16>
    %c0_1 = arith.constant 0 : index
    %c0_2 = arith.constant 0 : index
    %1 = vector.load %arg3[%c0_1, %c0_2] : memref<128x128xbf16, #tpu.memory_space<vmem>>, vector<128x128xbf16>
    %cst = arith.constant dense<0.000000e+00> : vector<128x128xf32>
    %2 = tpu.matmul %0, %1, %cst {dimension_numbers = #tpu.dot_dimension_numbers<[1], [0], [0], [1], [0, 0, 1, 1], [], []>} : vector<128x128xbf16>, vector<128x128xbf16>, vector<128x128xf32> -> vector<128x128xf32>
    %c0_3 = arith.constant 0 : index
    %c0_4 = arith.constant 0 : index
    %3 = vector.load %arg5[%c0_3, %c0_4] : memref<1x128xf32, #tpu.memory_space<vmem>>, vector<1x128xf32>
    %4 = vector.broadcast %3 : vector<1x128xf32> to vector<128x128xf32>
    %5 = arith.addf %2, %4 : vector<128x128xf32>
    %cst_5 = arith.constant 0.000000e+00 : f32
    %6 = vector.broadcast %cst_5 : f32 to vector<128x128xf32>
    %7 = arith.maximumf %5, %6 : vector<128x128xf32>
    %8 = arith.truncf %7 : vector<128x128xf32> to vector<128x128xbf16>
    %c0_6 = arith.constant 0 : index
    %c0_7 = arith.constant 0 : index
    %9 = vector.load %arg4[%c0_6, %c0_7] : memref<128x128xbf16, #tpu.memory_space<vmem>>, vector<128x128xbf16>
    %cst_8 = arith.constant dense<0.000000e+00> : vector<128x128xf32>
    %10 = tpu.matmul %8, %9, %cst_8 {dimension_numbers = #tpu.dot_dimension_numbers<[1], [0], [0], [1], [0, 0, 1, 1], [], []>} : vector<128x128xbf16>, vector<128x128xbf16>, vector<128x128xf32> -> vector<128x128xf32>
    %c0_9 = arith.constant 0 : index
    %c0_10 = arith.constant 0 : index
    %11 = vector.load %arg2[%c0_9, %c0_10] : memref<8x128xf32, #tpu.memory_space<vmem>>, vector<8x128xf32>
    %cst_11 = arith.constant dense<0.000000e+00> : vector<8x128xf32>
    %12 = tpu.matmul %11, %10, %cst_11 {dimension_numbers = #tpu.dot_dimension_numbers<[1], [0], [0], [1], [0, 0, 1, 1], [], []>} : vector<8x128xf32>, vector<128x128xf32>, vector<8x128xf32> -> vector<8x128xf32>
    %c0_12 = arith.constant 0 : index
    %c0_13 = arith.constant 0 : index
    %13 = vector.load %arg6[%c0_12, %c0_13] : memref<8x128xf32, #tpu.memory_space<vmem>>, vector<8x128xf32>
    tpu.vector_store %arg6[%c0_12, %c0_13], %12 {strides = array<i32>} : memref<8x128xf32, #tpu.memory_space<vmem>>, vector<8x128xf32>,
    return
  }
  func.func @transform_0(%arg0: i32) -> (i32, i32) {
    %c0_i32 = arith.constant 0 : i32
    %c0_i32_0 = arith.constant 0 : i32
    return %arg0, %c0_i32 : i32, i32
  }
  func.func @transform_1(%arg0: i32) -> (i32, i32) {
    %c0_i32 = arith.constant 0 : i32
    %c0_i32_0 = arith.constant 0 : i32
    return %c0_i32, %arg0 : i32, i32
  }
  func.func @transform_2(%arg0: i32) -> (i32, i32) {
    %c0_i32 = arith.constant 0 : i32
    %c0_i32_0 = arith.constant 0 : i32
    %c0_i32_1 = arith.constant 0 : i32
    return %c0_i32, %c0_i32_0 : i32, i32
  }
  func.func @transform_3(%arg0: i32) -> (i32, i32) {
    %c0_i32 = arith.constant 0 : i32
    %c0_i32_0 = arith.constant 0 : i32
    %c0_i32_1 = arith.constant 0 : i32
    return %c0_i32, %c0_i32_0 : i32, i32
  }
  func.func @transform_4(%arg0: i32) -> (i32, i32) {
    %c0_i32 = arith.constant 0 : i32
    %c0_i32_0 = arith.constant 0 : i32
    %c0_i32_1 = arith.constant 0 : i32
    return %c0_i32, %c0_i32_0 : i32, i32
  }
  func.func @transform_5(%arg0: i32) -> (i32, i32) {
    %c0_i32 = arith.constant 0 : i32
    %c0_i32_0 = arith.constant 0 : i32
    return %arg0, %c0_i32 : i32, i32
  }
}

module attributes {stable_mosaic.version = 11 : i64} {
  func.func @_head_kernel(%arg0: memref<8x128xf32, #tpu.memory_space<vmem>>, %arg1: memref<8x2176xf32, #tpu.memory_space<vmem>>, %arg2: memref<128x128xf32, #tpu.memory_space<vmem>>, %arg3: memref<2176x128xf32, #tpu.memory_space<vmem>>, %arg4: memref<1x128xf32, #tpu.memory_space<vmem>>, %arg5: memref<128x128xf32, #tpu.memory_space<vmem>>, %arg6: memref<1x128xf32, #tpu.memory_space<vmem>>, %arg7: memref<8x128xf32, #tpu.memory_space<vmem>>) attributes {dimension_semantics = [], scalar_prefetch = 0 : i64, scratch_operands = 0 : i64, tpu.core_type = #tpu.core_type<tc>} {
    %c0 = arith.constant 0 : index
    %c0_0 = arith.constant 0 : index
    %0 = vector.load %arg0[%c0, %c0_0] : memref<8x128xf32, #tpu.memory_space<vmem>>, vector<8x128xf32>
    %c0_1 = arith.constant 0 : index
    %c0_2 = arith.constant 0 : index
    %1 = vector.load %arg2[%c0_1, %c0_2] : memref<128x128xf32, #tpu.memory_space<vmem>>, vector<128x128xf32>
    %cst = arith.constant dense<0.000000e+00> : vector<8x128xf32>
    %2 = tpu.matmul %0, %1, %cst {dimension_numbers = #tpu.dot_dimension_numbers<[1], [0], [0], [1], [0, 0, 1, 1], [], []>} : vector<8x128xf32>, vector<128x128xf32>, vector<8x128xf32> -> vector<8x128xf32>
    %c0_3 = arith.constant 0 : index
    %c0_4 = arith.constant 0 : index
    %3 = vector.load %arg1[%c0_3, %c0_4] : memref<8x2176xf32, #tpu.memory_space<vmem>>, vector<8x2176xf32>
    %c0_5 = arith.constant 0 : index
    %c0_6 = arith.constant 0 : index
    %4 = vector.load %arg3[%c0_5, %c0_6] : memref<2176x128xf32, #tpu.memory_space<vmem>>, vector<2176x128xf32>
    %cst_7 = arith.constant dense<0.000000e+00> : vector<8x128xf32>
    %5 = tpu.matmul %3, %4, %cst_7 {dimension_numbers = #tpu.dot_dimension_numbers<[1], [0], [0], [1], [0, 0, 1, 1], [], []>} : vector<8x2176xf32>, vector<2176x128xf32>, vector<8x128xf32> -> vector<8x128xf32>
    %6 = arith.addf %2, %5 : vector<8x128xf32>
    %c0_8 = arith.constant 0 : index
    %c0_9 = arith.constant 0 : index
    %7 = vector.load %arg4[%c0_8, %c0_9] : memref<1x128xf32, #tpu.memory_space<vmem>>, vector<1x128xf32>
    %8 = vector.broadcast %7 : vector<1x128xf32> to vector<8x128xf32>
    %9 = arith.addf %6, %8 : vector<8x128xf32>
    %cst_10 = arith.constant 0.000000e+00 : f32
    %10 = vector.broadcast %cst_10 : f32 to vector<8x128xf32>
    %11 = arith.maximumf %9, %10 : vector<8x128xf32>
    %c0_11 = arith.constant 0 : index
    %c0_12 = arith.constant 0 : index
    %12 = vector.load %arg5[%c0_11, %c0_12] : memref<128x128xf32, #tpu.memory_space<vmem>>, vector<128x128xf32>
    %cst_13 = arith.constant dense<0.000000e+00> : vector<8x128xf32>
    %13 = tpu.matmul %11, %12, %cst_13 {dimension_numbers = #tpu.dot_dimension_numbers<[1], [0], [0], [1], [0, 0, 1, 1], [], []>} : vector<8x128xf32>, vector<128x128xf32>, vector<8x128xf32> -> vector<8x128xf32>
    %c0_14 = arith.constant 0 : index
    %c0_15 = arith.constant 0 : index
    %14 = vector.load %arg6[%c0_14, %c0_15] : memref<1x128xf32, #tpu.memory_space<vmem>>, vector<1x128xf32>
    %15 = vector.broadcast %14 : vector<1x128xf32> to vector<8x128xf32>
    %16 = arith.addf %13, %15 : vector<8x128xf32>
    %c0_16 = arith.constant 0 : index
    %c0_17 = arith.constant 0 : index
    %17 = vector.load %arg7[%c0_16, %c0_17] : memref<8x128xf32, #tpu.memory_space<vmem>>, vector<8x128xf32>
    tpu.vector_store %arg7[%c0_16, %c0_17], %16 {strides = array<i32>} : memref<8x128xf32, #tpu.memory_space<vmem>>, vector<8x128xf32>,
    return
  }
}

</mosaic_0001>

<llo_original>
// kernel: ptgcn_forward.2
$region0: #{ptgcn_forward.2}
  #allocation0 [shape = 'u32[]', space=smem, size = 0x4, offset = 0x4, fixed_abs, tag = 'smem constant byte address 0x4 - core index']
  #allocation1 [shape = 'u32[144,128]{1,0:T(1,128)}', space=vmem, size = 0x12000, scoped, tag = 'internal scratch']
  %s0 = inlined_call_operand.vmem [shape: bf16[128,128], index: 0, kind: input, shape index: {}]
  %s1 = inlined_call_operand.vmem [shape: f32[8,128], index: 1, kind: input, shape index: {}]
  %s2 = inlined_call_operand.vmem [shape: bf16[128,128], index: 2, kind: input, shape index: {}]
  %s3 = inlined_call_operand.vmem [shape: bf16[128,128], index: 3, kind: input, shape index: {}]
  %s4 = inlined_call_operand.vmem [shape: f32[1,128], index: 4, kind: input, shape index: {}]
  %s5 = inlined_call_operand.vmem [shape: f32[8,128], index: 5, kind: output, shape index: {}]
  %s6 = sld [smem:[#allocation0]]
  $region30: #{ptgcn_forward.2} parent=0
    _
  %s8 = ssub.s32 1, %s6
  %s9 = scalar_select 0, %s8, %s6
  // Predicated region
  $region2: #{ptgcn_forward.2} parent=0 // pred_check
    _
  $region3: #{ptgcn_forward.2} parent=0 // pred_check_branch
    %11 = sbr.rel (0) target = $region5
  $region4: #{ptgcn_forward.2} parent=0 // pred_region
    _
  $region5: #{ptgcn_forward.2} parent=0 // pred_fallthru
    _
  // Predicated region
  $region6: #{ptgcn_forward.2} parent=0 // pred_check
    _
  $region7: #{ptgcn_forward.2} parent=0 // pred_check_branch
    %13 = sbr.rel (0) target = $region9
  $region8: #{ptgcn_forward.2} parent=0 // pred_region
    _
  $region9: #{ptgcn_forward.2} parent=0 // pred_fallthru
    _
  // Predicated region
  $region10: #{ptgcn_forward.2} parent=0 // pred_check
    _
  $region11: #{ptgcn_forward.2} parent=0 // pred_check_branch
    %15 = sbr.rel (0) target = $region13
  $region12: #{ptgcn_forward.2} parent=0 // pred_region
    _
  $region13: #{ptgcn_forward.2} parent=0 // pred_fallthru
    _
  // Predicated region
  $region14: #{ptgcn_forward.2} parent=0 // pred_check
    _
  $region15: #{ptgcn_forward.2} parent=0 // pred_check_branch
    %17 = sbr.rel (0) target = $region17
  $region16: #{ptgcn_forward.2} parent=0 // pred_region
    _
  $region17: #{ptgcn_forward.2} parent=0 // pred_fallthru
    _
  // Predicated region
  $region18: #{ptgcn_forward.2} parent=0 // pred_check
    _
  $region19: #{ptgcn_forward.2} parent=0 // pred_check_branch
    %19 = sbr.rel (0) target = $region21
  $region20: #{ptgcn_forward.2} parent=0 // pred_region
    _
  $region21: #{ptgcn_forward.2} parent=0 // pred_fallthru
    _
  %v21 = vld [vmem:[%s0] sm:$0xf]
  %v22 = vld [vmem:[%s0 + $0x4] sm:$0xf]
  %v23 = vld [vmem:[%s0 + $0x8] sm:$0xf]
  %v24 = vld [vmem:[%s0 + $0xc] sm:$0xf]
  %v25 = vld [vmem:[%s0 + $0x10] sm:$0xf]
  %v26 = vld [vmem:[%s0 + $0x14] sm:$0xf]
  %v27 = vld [vmem:[%s0 + $0x18] sm:$0xf]
  %v28 = vld [vmem:[%s0 + $0x1c] sm:$0xf]
  %v29 = vld [vmem:[%s0 + $0x20] sm:$0xf]
  %v30 = vld [vmem:[%s0 + $0x24] sm:$0xf]
  %v31 = vld [vmem:[%s0 + $0x28] sm:$0xf]
  %v32 = vld [vmem:[%s0 + $0x2c] sm:$0xf]
  %v33 = vld [vmem:[%s0 + $0x30] sm:$0xf]
  %v34 = vld [vmem:[%s0 + $0x34] sm:$0xf]
  %v35 = vld [vmem:[%s0 + $0x38] sm:$0xf]
  %v36 = vld [vmem:[%s0 + $0x3c] sm:$0xf]
  %v37 = vld [vmem:[%s2] sm:$0xf]
  %v38 = vld [vmem:[%s2 + $0x4] sm:$0xf]
  %v39 = vld [vmem:[%s2 + $0x8] sm:$0xf]
  %v40 = vld [vmem:[%s2 + $0xc] sm:$0xf]
  %v41 = vld [vmem:[%s2 + $0x10] sm:$0xf]
  %v42 = vld [vmem:[%s2 + $0x14] sm:$0xf]
  %v43 = vld [vmem:[%s2 + $0x18] sm:$0xf]
  %v44 = vld [vmem:[%s2 + $0x1c] sm:$0xf]
  %v45 = vld [vmem:[%s2 + $0x20] sm:$0xf]
  %v46 = vld [vmem:[%s2 + $0x24] sm:$0xf]
  %v47 = vld [vmem:[%s2 + $0x28] sm:$0xf]
  %v48 = vld [vmem:[%s2 + $0x2c] sm:$0xf]
  %v49 = vld [vmem:[%s2 + $0x30] sm:$0xf]
  %v50 = vld [vmem:[%s2 + $0x34] sm:$0xf]
  %v51 = vld [vmem:[%s2 + $0x38] sm:$0xf]
  %v52 = vld [vmem:[%s2 + $0x3c] sm:$0xf]
  %v53 = vld [vmem:[%s4] sm:$0x1]
  %v55 = vlaneseq
  %v56 = vshrl.u32 %v55, 7
  %v57 = vsub.s32 0, %v56
  %v58 = vrot.slane %v53, %v57
  %v76 = vunpack.c.l.b16 %v21
  %v77 = vunpack.c.l.b16 %v22
  %v78 = vunpack.c.l.b16 %v23
  %v79 = vunpack.c.l.b16 %v24
  %v80 = vunpack.c.l.b16 %v25
  %v81 = vunpack.c.l.b16 %v26
  %v82 = vunpack.c.l.b16 %v27
  %v83 = vunpack.c.l.b16 %v28
  %v84 = vunpack.c.l.b16 %v29
  %v85 = vunpack.c.l.b16 %v30
  %v86 = vunpack.c.l.b16 %v31
  %v87 = vunpack.c.l.b16 %v32
  %v88 = vunpack.c.l.b16 %v33
  %v89 = vunpack.c.l.b16 %v34
  %v90 = vunpack.c.l.b16 %v35
  %v91 = vunpack.c.l.b16 %v36
  %v92 = vpack.c.b16 %v77, %v76
  %v93 = vpack.c.b16 %v79, %v78
  %v94 = vpack.c.b16 %v81, %v80
  %v95 = vpack.c.b16 %v83, %v82
  %v96 = vpack.c.b16 %v85, %v84
  %v97 = vpack.c.b16 %v87, %v86
  %v98 = vpack.c.b16 %v89, %v88
  %v99 = vpack.c.b16 %v91, %v90
  %v124 = vunpack.c.l.b16 %v37
  %v125 = vunpack.c.l.b16 %v38
  %v126 = vunpack.c.l.b16 %v39
  %v127 = vunpack.c.l.b16 %v40
  %v128 = vunpack.c.l.b16 %v41
  %v129 = vunpack.c.l.b16 %v42
  %v130 = vunpack.c.l.b16 %v43
  %v131 = vunpack.c.l.b16 %v44
  %v132 = vunpack.c.l.b16 %v45
  %v133 = vunpack.c.l.b16 %v46
  %v134 = vunpack.c.l.b16 %v47
  %v135 = vunpack.c.l.b16 %v48
  %v136 = vunpack.c.l.b16 %v49
  %v137 = vunpack.c.l.b16 %v50
  %v138 = vunpack.c.l.b16 %v51
  %v139 = vunpack.c.l.b16 %v52
  %v140 = vpack.c.b16 %v125, %v124
  %v141 = vpack.c.b16 %v127, %v126
  %v142 = vpack.c.b16 %v129, %v128
  %v143 = vpack.c.b16 %v131, %v130
  %v144 = vpack.c.b16 %v133, %v132
  %v145 = vpack.c.b16 %v135, %v134
  %v146 = vpack.c.b16 %v137, %v136
  %v147 = vpack.c.b16 %v139, %v138
  %156 = vmatprep.subr.bf16.mxu0 0
  %157 = vmatpush1.bf16.msra.mxu0 %v140
  %158 = vmatprep.subr.bf16.mxu0 0
  %159 = vmatpush1.bf16.msra.mxu0 %v141
  %160 = vmatprep.subr.bf16.mxu0 0
  %161 = vmatpush1.bf16.msra.mxu0 %v142
  %162 = vmatprep.subr.bf16.mxu0 0
  %163 = vmatpush1.bf16.msra.mxu0 %v143
  %164 = vmatprep.subr.bf16.mxu0 0
  %165 = vmatpush1.bf16.msra.mxu0 %v144
  %166 = vmatprep.subr.bf16.mxu0 0
  %167 = vmatpush1.bf16.msra.mxu0 %v145
  %168 = vmatprep.subr.bf16.mxu0 0
  %169 = vmatpush1.bf16.msra.mxu0 %v146
  %170 = vmatprep.subr.bf16.mxu0 0
  %171 = vmatpush1.bf16.msra.mxu0 %v147
  %172 = vmatprep.subr.bf16.mxu0 0
  %173 = vmatpush1.bf16.msra.mxu0 0
  %174 = vmatprep.subr.bf16.mxu0 0
  %175 = vmatpush1.bf16.msra.mxu0 0
  %176 = vmatprep.subr.bf16.mxu0 0
  %177 = vmatpush1.bf16.msra.mxu0 0
  %178 = vmatprep.subr.bf16.mxu0 0
  %179 = vmatpush1.bf16.msra.mxu0 0
  %180 = vmatprep.subr.bf16.mxu0 0
  %181 = vmatpush1.bf16.msra.mxu0 0
  %182 = vmatprep.subr.bf16.mxu0 0
  %183 = vmatpush1.bf16.msra.mxu0 0
  %184 = vmatprep.subr.bf16.mxu0 0
  %185 = vmatpush1.bf16.msra.mxu0 0
  %186 = vmatprep.subr.bf16.mxu0 0
  %187 = vmatpush1.bf16.msra.mxu0 0
  %188 = vmatprep.mubr.bf16.mxu0 0
  %189 = vmatmul.mubr.bf16.gmra.mrb[0].mxu0 %v92
  %v190 = vpop.f32.mrb[0].mxu0
  %v191 = vadd.f32 %v58, %v190
  %v192 = vpop.f32.mrb[0].mxu0
  %v193 = vpop.f32.mrb[0].mxu0
  %v194 = vadd.f32 %v58, %v193
  %v195 = vpop.f32.mrb[0].mxu0
  %196 = vmatprep.mubr.bf16.mxu0 0
  %197 = vmatmul.mubr.bf16.gmra.mrb[0].mxu0 %v93
  %v198 = vpop.f32.mrb[0].mxu0
  %v199 = vadd.f32 %v58, %v198
  %v200 = vpop.f32.mrb[0].mxu0
  %v201 = vpop.f32.mrb[0].mxu0
  %v202 = vadd.f32 %v58, %v201
  %v203 = vpop.f32.mrb[0].mxu0
  %204 = vmatprep.mubr.bf16.mxu0 0
  %205 = vmatmul.mubr.bf16.gmra.mrb[0].mxu0 %v94
  %v206 = vpop.f32.mrb[0].mxu0
  %v207 = vadd.f32 %v58, %v206
  %v208 = vpop.f32.mrb[0].mxu0
  %v209 = vpop.f32.mrb[0].mxu0
  %v210 = vadd.f32 %v58, %v209
  %v211 = vpop.f32.mrb[0].mxu0
  %212 = vmatprep.mubr.bf16.mxu0 0
  %213 = vmatmul.mubr.bf16.gmra.mrb[0].mxu0 %v95
  %v214 = vpop.f32.mrb[0].mxu0
  %v215 = vadd.f32 %v58, %v214
  %v216 = vpop.f32.mrb[0].mxu0
  %v217 = vpop.f32.mrb[0].mxu0
  %v218 = vadd.f32 %v58, %v217
  %v219 = vpop.f32.mrb[0].mxu0
  %220 = vmatprep.mubr.bf16.mxu0 0
  %221 = vmatmul.mubr.bf16.gmra.mrb[0].mxu0 %v96
  %v222 = vpop.f32.mrb[0].mxu0
  %v223 = vadd.f32 %v58, %v222
  %v224 = vpop.f32.mrb[0].mxu0
  %v225 = vpop.f32.mrb[0].mxu0
  %v226 = vadd.f32 %v58, %v225
  %v227 = vpop.f32.mrb[0].mxu0
  %228 = vmatprep.mubr.bf16.mxu0 0
  %229 = vmatmul.mubr.bf16.gmra.mrb[0].mxu0 %v97
  %v230 = vpop.f32.mrb[0].mxu0
  %v231 = vadd.f32 %v58, %v230
  %v232 = vpop.f32.mrb[0].mxu0
  %v233 = vpop.f32.mrb[0].mxu0
  %v234 = vadd.f32 %v58, %v233
  %v235 = vpop.f32.mrb[0].mxu0
  %236 = vmatprep.mubr.bf16.mxu0 0
  %237 = vmatmul.mubr.bf16.gmra.mrb[0].mxu0 %v98
  %v238 = vpop.f32.mrb[0].mxu0
  %v239 = vadd.f32 %v58, %v238
  %v240 = vpop.f32.mrb[0].mxu0
  %v241 = vpop.f32.mrb[0].mxu0
  %v242 = vadd.f32 %v58, %v241
  %v243 = vpop.f32.mrb[0].mxu0
  %244 = vmatprep.mubr.bf16.mxu0 0
  %245 = vmatmul.mubr.bf16.gmra.mrb[0].mxu0 %v99
  %v246 = vpop.f32.mrb[0].mxu0
  %v247 = vadd.f32 %v58, %v246
  %v248 = vpop.f32.mrb[0].mxu0
  %v249 = vpop.f32.mrb[0].mxu0
  %v250 = vadd.f32 %v58, %v249
  %v251 = vpop.f32.mrb[0].mxu0
  %252 = vdwg.mxu0
  %v253 = vmax.f32 %v191, 0.0
  %v254 = vmax.f32 %v194, 0.0
  %v255 = vmax.f32 %v199, 0.0
  %v256 = vmax.f32 %v202, 0.0
  %v257 = vmax.f32 %v207, 0.0
  %v258 = vmax.f32 %v210, 0.0
  %v259 = vmax.f32 %v215, 0.0
  %v260 = vmax.f32 %v218, 0.0
  %v261 = vmax.f32 %v223, 0.0
  %v262 = vmax.f32 %v226, 0.0
  %v263 = vmax.f32 %v231, 0.0
  %v264 = vmax.f32 %v234, 0.0
  %v265 = vmax.f32 %v239, 0.0
  %v266 = vmax.f32 %v242, 0.0
  %v267 = vmax.f32 %v247, 0.0
  %v268 = vmax.f32 %v250, 0.0
  %v269 = vpack.c.bf16 %v254, %v253
  %v270 = vpack.c.bf16 %v256, %v255
  %v271 = vpack.c.bf16 %v258, %v257
  %v272 = vpack.c.bf16 %v260, %v259
  %v273 = vpack.c.bf16 %v262, %v261
  %v274 = vpack.c.bf16 %v264, %v263
  %v275 = vpack.c.bf16 %v266, %v265
  %v276 = vpack.c.bf16 %v268, %v267
  %v277 = vld [vmem:[%s3] sm:$0xf]
  %v278 = vld [vmem:[%s3 + $0x4] sm:$0xf]
  %v279 = vld [vmem:[%s3 + $0x8] sm:$0xf]
  %v280 = vld [vmem:[%s3 + $0xc] sm:$0xf]
  %v281 = vld [vmem:[%s3 + $0x10] sm:$0xf]
  %v282 = vld [vmem:[%s3 + $0x14] sm:$0xf]
  %v283 = vld [vmem:[%s3 + $0x18] sm:$0xf]
  %v284 = vld [vmem:[%s3 + $0x1c] sm:$0xf]
  %v285 = vld [vmem:[%s3 + $0x20] sm:$0xf]
  %v286 = vld [vmem:[%s3 + $0x24] sm:$0xf]
  %v287 = vld [vmem:[%s3 + $0x28] sm:$0xf]
  %v288 = vld [vmem:[%s3 + $0x2c] sm:$0xf]
  %v289 = vld [vmem:[%s3 + $0x30] sm:$0xf]
  %v290 = vld [vmem:[%s3 + $0x34] sm:$0xf]
  %v291 = vld [vmem:[%s3 + $0x38] sm:$0xf]
  %v292 = vld [vmem:[%s3 + $0x3c] sm:$0xf]
  %v309 = vunpack.c.l.b16 %v277
  %v310 = vunpack.c.l.b16 %v278
  %v311 = vunpack.c.l.b16 %v279
  %v312 = vunpack.c.l.b16 %v280
  %v313 = vunpack.c.l.b16 %v281
  %v314 = vunpack.c.l.b16 %v282
  %v315 = vunpack.c.l.b16 %v283
  %v316 = vunpack.c.l.b16 %v284
  %v317 = vunpack.c.l.b16 %v285
  %v318 = vunpack.c.l.b16 %v286
  %v319 = vunpack.c.l.b16 %v287
  %v320 = vunpack.c.l.b16 %v288
  %v321 = vunpack.c.l.b16 %v289
  %v322 = vunpack.c.l.b16 %v290
  %v323 = vunpack.c.l.b16 %v291
  %v324 = vunpack.c.l.b16 %v292
  %v325 = vpack.c.b16 %v310, %v309
  %v326 = vpack.c.b16 %v312, %v311
  %v327 = vpack.c.b16 %v314, %v313
  %v328 = vpack.c.b16 %v316, %v315
  %v329 = vpack.c.b16 %v318, %v317
  %v330 = vpack.c.b16 %v320, %v319
  %v331 = vpack.c.b16 %v322, %v321
  %v332 = vpack.c.b16 %v324, %v323
  %341 = vmatprep.subr.bf16.mxu0 0
  %342 = vmatpush1.bf16.msra.mxu0 %v325
  %343 = vmatprep.subr.bf16.mxu0 0
  %344 = vmatpush1.bf16.msra.mxu0 %v326
  %345 = vmatprep.subr.bf16.mxu0 0
  %346 = vmatpush1.bf16.msra.mxu0 %v327
  %347 = vmatprep.subr.bf16.mxu0 0
  %348 = vmatpush1.bf16.msra.mxu0 %v328
  %349 = vmatprep.subr.bf16.mxu0 0
  %350 = vmatpush1.bf16.msra.mxu0 %v329
  %351 = vmatprep.subr.bf16.mxu0 0
  %352 = vmatpush1.bf16.msra.mxu0 %v330
  %353 = vmatprep.subr.bf16.mxu0 0
  %354 = vmatpush1.bf16.msra.mxu0 %v331
  %355 = vmatprep.subr.bf16.mxu0 0
  %356 = vmatpush1.bf16.msra.mxu0 %v332
  %357 = vmatprep.subr.bf16.mxu0 0
  %358 = vmatpush1.bf16.msra.mxu0 0
  %359 = vmatprep.subr.bf16.mxu0 0
  %360 = vmatpush1.bf16.msra.mxu0 0
  %361 = vmatprep.subr.bf16.mxu0 0
  %362 = vmatpush1.bf16.msra.mxu0 0
  %363 = vmatprep.subr.bf16.mxu0 0
  %364 = vmatpush1.bf16.msra.mxu0 0
  %365 = vmatprep.subr.bf16.mxu0 0
  %366 = vmatpush1.bf16.msra.mxu0 0
  %367 = vmatprep.subr.bf16.mxu0 0
  %368 = vmatpush1.bf16.msra.mxu0 0
  %369 = vmatprep.subr.bf16.mxu0 0
  %370 = vmatpush1.bf16.msra.mxu0 0
  %371 = vmatprep.subr.bf16.mxu0 0
  %372 = vmatpush1.bf16.msra.mxu0 0
  %373 = vmatprep.mubr.bf16.mxu0 0
  %374 = vmatmul.mubr.bf16.gmra.mrb[0].mxu0 %v269
  %v375 = vpop.f32.mrb[0].mxu0
  %v376 = vadd.f32 0.0, %v375
  %v377 = vpop.f32.mrb[0].mxu0
  %v378 = vpop.f32.mrb[0].mxu0
  %v379 = vadd.f32 0.0, %v378
  %v380 = vpop.f32.mrb[0].mxu0
  %381 = vmatprep.mubr.bf16.mxu0 0
  %382 = vmatmul.mubr.bf16.gmra.mrb[0].mxu0 %v270
  %v383 = vpop.f32.mrb[0].mxu0
  %v384 = vadd.f32 0.0, %v383
  %v385 = vpop.f32.mrb[0].mxu0
  %v386 = vpop.f32.mrb[0].mxu0
  %v387 = vadd.f32 0.0, %v386
  %v388 = vpop.f32.mrb[0].mxu0
  %389 = vmatprep.mubr.bf16.mxu0 0
  %390 = vmatmul.mubr.bf16.gmra.mrb[0].mxu0 %v271
  %v391 = vpop.f32.mrb[0].mxu0
  %v392 = vadd.f32 0.0, %v391
  %v393 = vpop.f32.mrb[0].mxu0
  %v394 = vpop.f32.mrb[0].mxu0
  %v395 = vadd.f32 0.0, %v394
  %v396 = vpop.f32.mrb[0].mxu0
  %397 = vmatprep.mubr.bf16.mxu0 0
  %398 = vmatmul.mubr.bf16.gmra.mrb[0].mxu0 %v272
  %v399 = vpop.f32.mrb[0].mxu0
  %v400 = vadd.f32 0.0, %v399
  %v401 = vpop.f32.mrb[0].mxu0
  %v402 = vpop.f32.mrb[0].mxu0
  %v403 = vadd.f32 0.0, %v402
  %v404 = vpop.f32.mrb[0].mxu0
  %405 = vmatprep.mubr.bf16.mxu0 0
  %406 = vmatmul.mubr.bf16.gmra.mrb[0].mxu0 %v273
  %v407 = vpop.f32.mrb[0].mxu0
  %v408 = vadd.f32 0.0, %v407
  %v409 = vpop.f32.mrb[0].mxu0
  %v410 = vpop.f32.mrb[0].mxu0
  %v411 = vadd.f32 0.0, %v410
  %v412 = vpop.f32.mrb[0].mxu0
  %413 = vmatprep.mubr.bf16.mxu0 0
  %414 = vmatmul.mubr.bf16.gmra.mrb[0].mxu0 %v274
  %v415 = vpop.f32.mrb[0].mxu0
  %v416 = vadd.f32 0.0, %v415
  %v417 = vpop.f32.mrb[0].mxu0
  %v418 = vpop.f32.mrb[0].mxu0
  %v419 = vadd.f32 0.0, %v418
  %v420 = vpop.f32.mrb[0].mxu0
  %421 = vmatprep.mubr.bf16.mxu0 0
  %422 = vmatmul.mubr.bf16.gmra.mrb[0].mxu0 %v275
  %v423 = vpop.f32.mrb[0].mxu0
  %v424 = vadd.f32 0.0, %v423
  %v425 = vpop.f32.mrb[0].mxu0
  %v426 = vpop.f32.mrb[0].mxu0
  %v427 = vadd.f32 0.0, %v426
  %v428 = vpop.f32.mrb[0].mxu0
  %429 = vmatprep.mubr.bf16.mxu0 0
  %430 = vmatmul.mubr.bf16.gmra.mrb[0].mxu0 %v276
  %v431 = vpop.f32.mrb[0].mxu0
  %v432 = vadd.f32 0.0, %v431
  %v433 = vpop.f32.mrb[0].mxu0
  %v434 = vpop.f32.mrb[0].mxu0
  %v435 = vadd.f32 0.0, %v434
  %v436 = vpop.f32.mrb[0].mxu0
  %437 = vdwg.mxu0
  %v438 = vld [vmem:[%s1] sm:$0xff]
  %439 = vmatprep.subr.mxu0 0.0
  %440 = vmatpush1.msra.mxu0 %v376
  %441 = vmatprep.subr.mxu0 0.0
  %442 = vmatpush1.msra.mxu0 %v379
  %443 = vmatprep.subr.mxu0 0.0
  %444 = vmatpush1.msra.mxu0 %v384
  %445 = vmatprep.subr.mxu0 0.0
  %446 = vmatpush1.msra.mxu0 %v387
  %447 = vmatprep.subr.mxu0 0.0
  %448 = vmatpush1.msra.mxu0 %v392
  %449 = vmatprep.subr.mxu0 0.0
  %450 = vmatpush1.msra.mxu0 %v395
  %451 = vmatprep.subr.mxu0 0.0
  %452 = vmatpush1.msra.mxu0 %v400
  %453 = vmatprep.subr.mxu0 0.0
  %454 = vmatpush1.msra.mxu0 %v403
  %455 = vmatprep.subr.mxu0 0.0
  %456 = vmatpush1.msra.mxu0 %v408
  %457 = vmatprep.subr.mxu0 0.0
  %458 = vmatpush1.msra.mxu0 %v411
  %459 = vmatprep.subr.mxu0 0.0
  %460 = vmatpush1.msra.mxu0 %v416
  %461 = vmatprep.subr.mxu0 0.0
  %462 = vmatpush1.msra.mxu0 %v419
  %463 = vmatprep.subr.mxu0 0.0
  %464 = vmatpush1.msra.mxu0 %v424
  %465 = vmatprep.subr.mxu0 0.0
  %466 = vmatpush1.msra.mxu0 %v427
  %467 = vmatprep.subr.mxu0 0.0
  %468 = vmatpush1.msra.mxu0 %v432
  %469 = vmatprep.subr.mxu0 0.0
  %470 = vmatpush1.msra.mxu0 %v435
  %471 = vmatprep.subr.mxu0 0.0
  %472 = vmatpush1.msra.mxu0 0.0
  %473 = vmatprep.subr.mxu0 0.0
  %474 = vmatpush1.msra.mxu0 0.0
  %475 = vmatprep.subr.mxu0 0.0
  %476 = vmatpush1.msra.mxu0 0.0
  %477 = vmatprep.subr.mxu0 0.0
  %478 = vmatpush1.msra.mxu0 0.0
  %479 = vmatprep.subr.mxu0 0.0
  %480 = vmatpush1.msra.mxu0 0.0
  %481 = vmatprep.subr.mxu0 0.0
  %482 = vmatpush1.msra.mxu0 0.0
  %483 = vmatprep.subr.mxu0 0.0
  %484 = vmatpush1.msra.mxu0 0.0
  %485 = vmatprep.subr.mxu0 0.0
  %486 = vmatpush1.msra.mxu0 0.0
  %487 = vmatprep.subr.mxu0 0.0
  %488 = vmatpush1.msra.mxu0 0.0
  %489 = vmatprep.subr.mxu0 0.0
  %490 = vmatpush1.msra.mxu0 0.0
  %491 = vmatprep.subr.mxu0 0.0
  %492 = vmatpush1.msra.mxu0 0.0
  %493 = vmatprep.subr.mxu0 0.0
  %494 = vmatpush1.msra.mxu0 0.0
  %495 = vmatprep.subr.mxu0 0.0
  %496 = vmatpush1.msra.mxu0 0.0
  %497 = vmatprep.subr.mxu0 0.0
  %498 = vmatpush1.msra.mxu0 0.0
  %499 = vmatprep.subr.mxu0 0.0
  %500 = vmatpush1.msra.mxu0 0.0
  %501 = vmatprep.subr.mxu0 0.0
  %502 = vmatpush1.msra.mxu0 0.0
  %503 = vmatprep.mubr.f32.mxu0 0.0
  %504 = vmatmul.mubr.f32.gmra.mrb[0].mxu0 %v438
  %v505 = vpop.f32.mrb[0].mxu0
  %v506 = vadd.f32 0.0, %v505
  %v507 = vpop.f32.mrb[0].mxu0
  %508 = vdwg.mxu0
  %509 = vst [vmem:[%s5] sm:$0xff] %v506
  // Predicated region
  $region22: #{ptgcn_forward.2} parent=0 // pred_check
    _
  $region23: #{ptgcn_forward.2} parent=0 // pred_check_branch
    %511 = sbr.rel (0) target = $region25
  $region24: #{ptgcn_forward.2} parent=0 // pred_region
    _
  $region25: #{ptgcn_forward.2} parent=0 // pred_fallthru
    _
  // Predicated region
  $region26: #{ptgcn_forward.2} parent=0 // pred_check
    _
  $region27: #{ptgcn_forward.2} parent=0 // pred_check_branch
    %513 = sbr.rel (0) target = $region29
  $region28: #{ptgcn_forward.2} parent=0 // pred_region
    _
  $region29: #{ptgcn_forward.2} parent=0 // pred_fallthru
    _

// kernel: ptgcn_forward.3
$region0: #{ptgcn_forward.3}
  #allocation0 [shape = 'u32[]', space=smem, size = 0x4, offset = 0x4, fixed_abs, tag = 'smem constant byte address 0x4 - core index']
  #allocation1 [shape = 'u32[144,128]{1,0:T(1,128)}', space=vmem, size = 0x12000, scoped, tag = 'internal scratch']
  %s0 = inlined_call_operand.vmem [shape: f32[8,128], index: 0, kind: input, shape index: {}]
  %s1 = inlined_call_operand.vmem [shape: f32[8,2176], index: 1, kind: input, shape index: {}]
  %s2 = inlined_call_operand.vmem [shape: f32[128,128], index: 2, kind: input, shape index: {}]
  %s3 = inlined_call_operand.vmem [shape: f32[2176,128], index: 3, kind: input, shape index: {}]
  %s4 = inlined_call_operand.vmem [shape: f32[1,128], index: 4, kind: input, shape index: {}]
  %s5 = inlined_call_operand.vmem [shape: f32[128,128], index: 5, kind: input, shape index: {}]
  %s6 = inlined_call_operand.vmem [shape: f32[1,128], index: 6, kind: input, shape index: {}]
  %s7 = inlined_call_operand.vmem [shape: f32[8,128], index: 7, kind: output, shape index: {}]
  %s8 = sld [smem:[#allocation0]]
  $region38: #{ptgcn_forward.3} parent=0
    _
  %s10 = ssub.s32 1, %s8
  %s11 = scalar_select 0, %s10, %s8
  // Predicated region
  $region2: #{ptgcn_forward.3} parent=0 // pred_check
    _
  $region3: #{ptgcn_forward.3} parent=0 // pred_check_branch
    %13 = sbr.rel (0) target = $region5
  $region4: #{ptgcn_forward.3} parent=0 // pred_region
    _
  $region5: #{ptgcn_forward.3} parent=0 // pred_fallthru
    _
  // Predicated region
  $region6: #{ptgcn_forward.3} parent=0 // pred_check
    _
  $region7: #{ptgcn_forward.3} parent=0 // pred_check_branch
    %15 = sbr.rel (0) target = $region9
  $region8: #{ptgcn_forward.3} parent=0 // pred_region
    _
  $region9: #{ptgcn_forward.3} parent=0 // pred_fallthru
    _
  // Predicated region
  $region10: #{ptgcn_forward.3} parent=0 // pred_check
    _
  $region11: #{ptgcn_forward.3} parent=0 // pred_check_branch
    %17 = sbr.rel (0) target = $region13
  $region12: #{ptgcn_forward.3} parent=0 // pred_region
    _
  $region13: #{ptgcn_forward.3} parent=0 // pred_fallthru
    _
  // Predicated region
  $region14: #{ptgcn_forward.3} parent=0 // pred_check
    _
  $region15: #{ptgcn_forward.3} parent=0 // pred_check_branch
    %19 = sbr.rel (0) target = $region17
  $region16: #{ptgcn_forward.3} parent=0 // pred_region
    _
  $region17: #{ptgcn_forward.3} parent=0 // pred_fallthru
    _
  // Predicated region
  $region18: #{ptgcn_forward.3} parent=0 // pred_check
    _
  $region19: #{ptgcn_forward.3} parent=0 // pred_check_branch
    %21 = sbr.rel (0) target = $region21
  $region20: #{ptgcn_forward.3} parent=0 // pred_region
    _
  $region21: #{ptgcn_forward.3} parent=0 // pred_fallthru
    _
  // Predicated region
  $region22: #{ptgcn_forward.3} parent=0 // pred_check
    _
  $region23: #{ptgcn_forward.3} parent=0 // pred_check_branch
    %23 = sbr.rel (0) target = $region25
  $region24: #{ptgcn_forward.3} parent=0 // pred_region
    _
  $region25: #{ptgcn_forward.3} parent=0 // pred_fallthru
    _
  // Predicated region
  $region26: #{ptgcn_forward.3} parent=0 // pred_check
    _
  $region27: #{ptgcn_forward.3} parent=0 // pred_check_branch
    %25 = sbr.rel (0) target = $region29
  $region28: #{ptgcn_forward.3} parent=0 // pred_region
    _
  $region29: #{ptgcn_forward.3} parent=0 // pred_fallthru
    _
  %v26 = vld [vmem:[%s0] sm:$0xff]
  %v27 = vld [vmem:[%s2] sm:$0xff]
  %v28 = vld [vmem:[%s2 + $0x8] sm:$0xff]
  %v29 = vld [vmem:[%s2 + $0x10] sm:$0xff]
  %v30 = vld [vmem:[%s2 + $0x18] sm:$0xff]
  %v31 = vld [vmem:[%s2 + $0x20] sm:$0xff]
  %v32 = vld [vmem:[%s2 + $0x28] sm:$0xff]
  %v33 = vld [vmem:[%s2 + $0x30] sm:$0xff]
  %v34 = vld [vmem:[%s2 + $0x38] sm:$0xff]
  %v35 = vld [vmem:[%s2 + $0x40] sm:$0xff]
  %v36 = vld [vmem:[%s2 + $0x48] sm:$0xff]
  %v37 = vld [vmem:[%s2 + $0x50] sm:$0xff]
  %v38 = vld [vmem:[%s2 + $0x58] sm:$0xff]
  %v39 = vld [vmem:[%s2 + $0x60] sm:$0xff]
  %v40 = vld [vmem:[%s2 + $0x68] sm:$0xff]
  %v41 = vld [vmem:[%s2 + $0x70] sm:$0xff]
  %v42 = vld [vmem:[%s2 + $0x78] sm:$0xff]
  %v43 = vld [vmem:[%s1] sm:$0xff]
  %v44 = vld [vmem:[%s1 + $0x8] sm:$0xff]
  %v45 = vld [vmem:[%s1 + $0x10] sm:$0xff]
  %v46 = vld [vmem:[%s1 + $0x18] sm:$0xff]
  %v47 = vld [vmem:[%s1 + $0x20] sm:$0xff]
  %v48 = vld [vmem:[%s1 + $0x28] sm:$0xff]
  %v49 = vld [vmem:[%s1 + $0x30] sm:$0xff]
  %v50 = vld [vmem:[%s1 + $0x38] sm:$0xff]
  %v51 = vld [vmem:[%s1 + $0x40] sm:$0xff]
  %v52 = vld [vmem:[%s1 + $0x48] sm:$0xff]
  %v53 = vld [vmem:[%s1 + $0x50] sm:$0xff]
  %v54 = vld [vmem:[%s1 + $0x58] sm:$0xff]
  %v55 = vld [vmem:[%s1 + $0x60] sm:$0xff]
  %v56 = vld [vmem:[%s1 + $0x68] sm:$0xff]
  %v57 = vld [vmem:[%s1 + $0x70] sm:$0xff]
  %v58 = vld [vmem:[%s1 + $0x78] sm:$0xff]
  %v59 = vld [vmem:[%s1 + $0x80] sm:$0xff]
  %v60 = vld [vmem:[%s3] sm:$0xff]
  %v61 = vld [vmem:[%s3 + $0x8] sm:$0xff]
  %v62 = vld [vmem:[%s3 + $0x10] sm:$0xff]
  %v63 = vld [vmem:[%s3 + $0x18] sm:$0xff]
  %v64 = vld [vmem:[%s3 + $0x20] sm:$0xff]
  %v65 = vld [vmem:[%s3 + $0x28] sm:$0xff]
  %v66 = vld [vmem:[%s3 + $0x30] sm:$0xff]
  %v67 = vld [vmem:[%s3 + $0x38] sm:$0xff]
  %v68 = vld [vmem:[%s3 + $0x40] sm:$0xff]
  %v69 = vld [vmem:[%s3 + $0x48] sm:$0xff]
  %v70 = vld [vmem:[%s3 + $0x50] sm:$0xff]
  %v71 = vld [vmem:[%s3 + $0x58] sm:$0xff]
  %v72 = vld [vmem:[%s3 + $0x60] sm:$0xff]
  %v73 = vld [vmem:[%s3 + $0x68] sm:$0xff]
  %v74 = vld [vmem:[%s3 + $0x70] sm:$0xff]
  %v75 = vld [vmem:[%s3 + $0x78] sm:$0xff]
  %v76 = vld [vmem:[%s3 + $0x80] sm:$0xff]
  %v77 = vld [vmem:[%s3 + $0x88] sm:$0xff]
  %v78 = vld [vmem:[%s3 + $0x90] sm:$0xff]
  %v79 = vld [vmem:[%s3 + $0x98] sm:$0xff]
  %v80 = vld [vmem:[%s3 + $0xa0] sm:$0xff]
  %v81 = vld [vmem:[%s3 + $0xa8] sm:$0xff]
  %v82 = vld [vmem:[%s3 + $0xb0] sm:$0xff]
  %v83 = vld [vmem:[%s3 + $0xb8] sm:$0xff]
  %v84 = vld [vmem:[%s3 + $0xc0] sm:$0xff]
  %v85 = vld [vmem:[%s3 + $0xc8] sm:$0xff]
  %v86 = vld [vmem:[%s3 + $0xd0] sm:$0xff]
  %v87 = vld [vmem:[%s3 + $0xd8] sm:$0xff]
  %v88 = vld [vmem:[%s3 + $0xe0] sm:$0xff]
  %v89 = vld [vmem:[%s3 + $0xe8] sm:$0xff]
  %v90 = vld [vmem:[%s3 + $0xf0] sm:$0xff]
  %v91 = vld [vmem:[%s3 + $0xf8] sm:$0xff]
  %v92 = vld [vmem:[%s3 + $0x100] sm:$0xff]
  %v93 = vld [vmem:[%s3 + $0x108] sm:$0xff]
  %v94 = vld [vmem:[%s3 + $0x110] sm:$0xff]
  %v95 = vld [vmem:[%s3 + $0x118] sm:$0xff]
  %v96 = vld [vmem:[%s3 + $0x120] sm:$0xff]
  %v97 = vld [vmem:[%s3 + $0x128] sm:$0xff]
  %v98 = vld [vmem:[%s3 + $0x130] sm:$0xff]
  %v99 = vld [vmem:[%s3 + $0x138] sm:$0xff]
  %v100 = vld [vmem:[%s3 + $0x140] sm:$0xff]
  %v101 = vld [vmem:[%s3 + $0x148] sm:$0xff]
  %v102 = vld [vmem:[%s3 + $0x150] sm:$0xff]
  %v103 = vld [vmem:[%s3 + $0x158] sm:$0xff]
  %v104 = vld [vmem:[%s3 + $0x160] sm:$0xff]
  %v105 = vld [vmem:[%s3 + $0x168] sm:$0xff]
  %v106 = vld [vmem:[%s3 + $0x170] sm:$0xff]
  %v107 = vld [vmem:[%s3 + $0x178] sm:$0xff]
  %v108 = vld [vmem:[%s3 + $0x180] sm:$0xff]
  %v109 = vld [vmem:[%s3 + $0x188] sm:$0xff]
  %v110 = vld [vmem:[%s3 + $0x190] sm:$0xff]
  %v111 = vld [vmem:[%s3 + $0x198] sm:$0xff]
  %v112 = vld [vmem:[%s3 + $0x1a0] sm:$0xff]
  %v113 = vld [vmem:[%s3 + $0x1a8] sm:$0xff]
  %v114 = vld [vmem:[%s3 + $0x1b0] sm:$0xff]
  %v115 = vld [vmem:[%s3 + $0x1b8] sm:$0xff]
  %v116 = vld [vmem:[%s3 + $0x1c0] sm:$0xff]
  %v117 = vld [vmem:[%s3 + $0x1c8] sm:$0xff]
  %v118 = vld [vmem:[%s3 + $0x1d0] sm:$0xff]
  %v119 = vld [vmem:[%s3 + $0x1d8] sm:$0xff]
  %v120 = vld [vmem:[%s3 + $0x1e0] sm:$0xff]
  %v121 = vld [vmem:[%s3 + $0x1e8] sm:$0xff]
  %v122 = vld [vmem:[%s3 + $0x1f0] sm:$0xff]
  %v123 = vld [vmem:[%s3 + $0x1f8] sm:$0xff]
  %v124 = vld [vmem:[%s3 + $0x200] sm:$0xff]
  %v125 = vld [vmem:[%s3 + $0x208] sm:$0xff]
  %v126 = vld [vmem:[%s3 + $0x210] sm:$0xff]
  %v127 = vld [vmem:[%s3 + $0x218] sm:$0xff]
  %v128 = vld [vmem:[%s3 + $0x220] sm:$0xff]
  %v129 = vld [vmem:[%s3 + $0x228] sm:$0xff]
  %v130 = vld [vmem:[%s3 + $0x230] sm:$0xff]
  %v131 = vld [vmem:[%s3 + $0x238] sm:$0xff]
  %v132 = vld [vmem:[%s3 + $0x240] sm:$0xff]
  %v133 = vld [vmem:[%s3 + $0x248] sm:$0xff]
  %v134 = vld [vmem:[%s3 + $0x250] sm:$0xff]
  %v135 = vld [vmem:[%s3 + $0x258] sm:$0xff]
  %v136 = vld [vmem:[%s3 + $0x260] sm:$0xff]
  %v137 = vld [vmem:[%s3 + $0x268] sm:$0xff]
  %v138 = vld [vmem:[%s3 + $0x270] sm:$0xff]
  %v139 = vld [vmem:[%s3 + $0x278] sm:$0xff]
  %v140 = vld [vmem:[%s3 + $0x280] sm:$0xff]
  %v141 = vld [vmem:[%s3 + $0x288] sm:$0xff]
  %v142 = vld [vmem:[%s3 + $0x290] sm:$0xff]
  %v143 = vld [vmem:[%s3 + $0x298] sm:$0xff]
  %v144 = vld [vmem:[%s3 + $0x2a0] sm:$0xff]
  %v145 = vld [vmem:[%s3 + $0x2a8] sm:$0xff]
  %v146 = vld [vmem:[%s3 + $0x2b0] sm:$0xff]
  %v147 = vld [vmem:[%s3 + $0x2b8] sm:$0xff]
  %v148 = vld [vmem:[%s3 + $0x2c0] sm:$0xff]
  %v149 = vld [vmem:[%s3 + $0x2c8] sm:$0xff]
  %v150 = vld [vmem:[%s3 + $0x2d0] sm:$0xff]
  %v151 = vld [vmem:[%s3 + $0x2d8] sm:$0xff]
  %v152 = vld [vmem:[%s3 + $0x2e0] sm:$0xff]
  %v153 = vld [vmem:[%s3 + $0x2e8] sm:$0xff]
  %v154 = vld [vmem:[%s3 + $0x2f0] sm:$0xff]
  %v155 = vld [vmem:[%s3 + $0x2f8] sm:$0xff]
  %v156 = vld [vmem:[%s3 + $0x300] sm:$0xff]
  %v157 = vld [vmem:[%s3 + $0x308] sm:$0xff]
  %v158 = vld [vmem:[%s3 + $0x310] sm:$0xff]
  %v159 = vld [vmem:[%s3 + $0x318] sm:$0xff]
  %v160 = vld [vmem:[%s3 + $0x320] sm:$0xff]
  %v161 = vld [vmem:[%s3 + $0x328] sm:$0xff]
  %v162 = vld [vmem:[%s3 + $0x330] sm:$0xff]
  %v163 = vld [vmem:[%s3 + $0x338] sm:$0xff]
  %v164 = vld [vmem:[%s3 + $0x340] sm:$0xff]
  %v165 = vld [vmem:[%s3 + $0x348] sm:$0xff]
  %v166 = vld [vmem:[%s3 + $0x350] sm:$0xff]
  %v167 = vld [vmem:[%s3 + $0x358] sm:$0xff]
  %v168 = vld [vmem:[%s3 + $0x360] sm:$0xff]
  %v169 = vld [vmem:[%s3 + $0x368] sm:$0xff]
  %v170 = vld [vmem:[%s3 + $0x370] sm:$0xff]
  %v171 = vld [vmem:[%s3 + $0x378] sm:$0xff]
  %v172 = vld [vmem:[%s3 + $0x380] sm:$0xff]
  %v173 = vld [vmem:[%s3 + $0x388] sm:$0xff]
  %v174 = vld [vmem:[%s3 + $0x390] sm:$0xff]
  %v175 = vld [vmem:[%s3 + $0x398] sm:$0xff]
  %v176 = vld [vmem:[%s3 + $0x3a0] sm:$0xff]
  %v177 = vld [vmem:[%s3 + $0x3a8] sm:$0xff]
  %v178 = vld [vmem:[%s3 + $0x3b0] sm:$0xff]
  %v179 = vld [vmem:[%s3 + $0x3b8] sm:$0xff]
  %v180 = vld [vmem:[%s3 + $0x3c0] sm:$0xff]
  %v181 = vld [vmem:[%s3 + $0x3c8] sm:$0xff]
  %v182 = vld [vmem:[%s3 + $0x3d0] sm:$0xff]
  %v183 = vld [vmem:[%s3 + $0x3d8] sm:$0xff]
  %v184 = vld [vmem:[%s3 + $0x3e0] sm:$0xff]
  %v185 = vld [vmem:[%s3 + $0x3e8] sm:$0xff]
  %v186 = vld [vmem:[%s3 + $0x3f0] sm:$0xff]
  %v187 = vld [vmem:[%s3 + $0x3f8] sm:$0xff]
  %v188 = vld [vmem:[%s3 + $0x400] sm:$0xff]
  %v189 = vld [vmem:[%s3 + $0x408] sm:$0xff]
  %v190 = vld [vmem:[%s3 + $0x410] sm:$0xff]
  %v191 = vld [vmem:[%s3 + $0x418] sm:$0xff]
  %v192 = vld [vmem:[%s3 + $0x420] sm:$0xff]
  %v193 = vld [vmem:[%s3 + $0x428] sm:$0xff]
  %v194 = vld [vmem:[%s3 + $0x430] sm:$0xff]
  %v195 = vld [vmem:[%s3 + $0x438] sm:$0xff]
  %v196 = vld [vmem:[%s3 + $0x440] sm:$0xff]
  %v197 = vld [vmem:[%s3 + $0x448] sm:$0xff]
  %v198 = vld [vmem:[%s3 + $0x450] sm:$0xff]
  %v199 = vld [vmem:[%s3 + $0x458] sm:$0xff]
  %v200 = vld [vmem:[%s3 + $0x460] sm:$0xff]
  %v201 = vld [vmem:[%s3 + $0x468] sm:$0xff]
  %v202 = vld [vmem:[%s3 + $0x470] sm:$0xff]
  %v203 = vld [vmem:[%s3 + $0x478] sm:$0xff]
  %v204 = vld [vmem:[%s3 + $0x480] sm:$0xff]
  %v205 = vld [vmem:[%s3 + $0x488] sm:$0xff]
  %v206 = vld [vmem:[%s3 + $0x490] sm:$0xff]
  %v207 = vld [vmem:[%s3 + $0x498] sm:$0xff]
  %v208 = vld [vmem:[%s3 + $0x4a0] sm:$0xff]
  %v209 = vld [vmem:[%s3 + $0x4a8] sm:$0xff]
  %v210 = vld [vmem:[%s3 + $0x4b0] sm:$0xff]
  %v211 = vld [vmem:[%s3 + $0x4b8] sm:$0xff]
  %v212 = vld [vmem:[%s3 + $0x4c0] sm:$0xff]
  %v213 = vld [vmem:[%s3 + $0x4c8] sm:$0xff]
  %v214 = vld [vmem:[%s3 + $0x4d0] sm:$0xff]
  %v215 = vld [vmem:[%s3 + $0x4d8] sm:$0xff]
  %v216 = vld [vmem:[%s3 + $0x4e0] sm:$0xff]
  %v217 = vld [vmem:[%s3 + $0x4e8] sm:$0xff]
  %v218 = vld [vmem:[%s3 + $0x4f0] sm:$0xff]
  %v219 = vld [vmem:[%s3 + $0x4f8] sm:$0xff]
  %v220 = vld [vmem:[%s3 + $0x500] sm:$0xff]
  %v221 = vld [vmem:[%s3 + $0x508] sm:$0xff]
  %v222 = vld [vmem:[%s3 + $0x510] sm:$0xff]
  %v223 = vld [vmem:[%s3 + $0x518] sm:$0xff]
  %v224 = vld [vmem:[%s3 + $0x520] sm:$0xff]
  %v225 = vld [vmem:[%s3 + $0x528] sm:$0xff]
  %v226 = vld [vmem:[%s3 + $0x530] sm:$0xff]
  %v227 = vld [vmem:[%s3 + $0x538] sm:$0xff]
  %v228 = vld [vmem:[%s3 + $0x540] sm:$0xff]
  %v229 = vld [vmem:[%s3 + $0x548] sm:$0xff]
  %v230 = vld [vmem:[%s3 + $0x550] sm:$0xff]
  %v231 = vld [vmem:[%s3 + $0x558] sm:$0xff]
  %v232 = vld [vmem:[%s3 + $0x560] sm:$0xff]
  %v233 = vld [vmem:[%s3 + $0x568] sm:$0xff]
  %v234 = vld [vmem:[%s3 + $0x570] sm:$0xff]
  %v235 = vld [vmem:[%s3 + $0x578] sm:$0xff]
  %v236 = vld [vmem:[%s3 + $0x580] sm:$0xff]
  %v237 = vld [vmem:[%s3 + $0x588] sm:$0xff]
  %v238 = vld [vmem:[%s3 + $0x590] sm:$0xff]
  %v239 = vld [vmem:[%s3 + $0x598] sm:$0xff]
  %v240 = vld [vmem:[%s3 + $0x5a0] sm:$0xff]
  %v241 = vld [vmem:[%s3 + $0x5a8] sm:$0xff]
  %v242 = vld [vmem:[%s3 + $0x5b0] sm:$0xff]
  %v243 = vld [vmem:[%s3 + $0x5b8] sm:$0xff]
  %v244 = vld [vmem:[%s3 + $0x5c0] sm:$0xff]
  %v245 = vld [vmem:[%s3 + $0x5c8] sm:$0xff]
  %v246 = vld [vmem:[%s3 + $0x5d0] sm:$0xff]
  %v247 = vld [vmem:[%s3 + $0x5d8] sm:$0xff]
  %v248 = vld [vmem:[%s3 + $0x5e0] sm:$0xff]
  %v249 = vld [vmem:[%s3 + $0x5e8] sm:$0xff]
  %v250 = vld [vmem:[%s3 + $0x5f0] sm:$0xff]
  %v251 = vld [vmem:[%s3 + $0x5f8] sm:$0xff]
  %v252 = vld [vmem:[%s3 + $0x600] sm:$0xff]
  %v253 = vld [vmem:[%s3 + $0x608] sm:$0xff]
  %v254 = vld [vmem:[%s3 + $0x610] sm:$0xff]
  %v255 = vld [vmem:[%s3 + $0x618] sm:$0xff]
  %v256 = vld [vmem:[%s3 + $0x620] sm:$0xff]
  %v257 = vld [vmem:[%s3 + $0x628] sm:$0xff]
  %v258 = vld [vmem:[%s3 + $0x630] sm:$0xff]
  %v259 = vld [vmem:[%s3 + $0x638] sm:$0xff]
  %v260 = vld [vmem:[%s3 + $0x640] sm:$0xff]
  %v261 = vld [vmem:[%s3 + $0x648] sm:$0xff]
  %v262 = vld [vmem:[%s3 + $0x650] sm:$0xff]
  %v263 = vld [vmem:[%s3 + $0x658] sm:$0xff]
  %v264 = vld [vmem:[%s3 + $0x660] sm:$0xff]
  %v265 = vld [vmem:[%s3 + $0x668] sm:$0xff]
  %v266 = vld [vmem:[%s3 + $0x670] sm:$0xff]
  %v267 = vld [vmem:[%s3 + $0x678] sm:$0xff]
  %v268 = vld [vmem:[%s3 + $0x680] sm:$0xff]
  %v269 = vld [vmem:[%s3 + $0x688] sm:$0xff]
  %v270 = vld [vmem:[%s3 + $0x690] sm:$0xff]
  %v271 = vld [vmem:[%s3 + $0x698] sm:$0xff]
  %v272 = vld [vmem:[%s3 + $0x6a0] sm:$0xff]
  %v273 = vld [vmem:[%s3 + $0x6a8] sm:$0xff]
  %v274 = vld [vmem:[%s3 + $0x6b0] sm:$0xff]
  %v275 = vld [vmem:[%s3 + $0x6b8] sm:$0xff]
  %v276 = vld [vmem:[%s3 + $0x6c0] sm:$0xff]
  %v277 = vld [vmem:[%s3 + $0x6c8] sm:$0xff]
  %v278 = vld [vmem:[%s3 + $0x6d0] sm:$0xff]
  %v279 = vld [vmem:[%s3 + $0x6d8] sm:$0xff]
  %v280 = vld [vmem:[%s3 + $0x6e0] sm:$0xff]
  %v281 = vld [vmem:[%s3 + $0x6e8] sm:$0xff]
  %v282 = vld [vmem:[%s3 + $0x6f0] sm:$0xff]
  %v283 = vld [vmem:[%s3 + $0x6f8] sm:$0xff]
  %v284 = vld [vmem:[%s3 + $0x700] sm:$0xff]
  %v285 = vld [vmem:[%s3 + $0x708] sm:$0xff]
  %v286 = vld [vmem:[%s3 + $0x710] sm:$0xff]
  %v287 = vld [vmem:[%s3 + $0x718] sm:$0xff]
  %v288 = vld [vmem:[%s3 + $0x720] sm:$0xff]
  %v289 = vld [vmem:[%s3 + $0x728] sm:$0xff]
  %v290 = vld [vmem:[%s3 + $0x730] sm:$0xff]
  %v291 = vld [vmem:[%s3 + $0x738] sm:$0xff]
  %v292 = vld [vmem:[%s3 + $0x740] sm:$0xff]
  %v293 = vld [vmem:[%s3 + $0x748] sm:$0xff]
  %v294 = vld [vmem:[%s3 + $0x750] sm:$0xff]
  %v295 = vld [vmem:[%s3 + $0x758] sm:$0xff]
  %v296 = vld [vmem:[%s3 + $0x760] sm:$0xff]
  %v297 = vld [vmem:[%s3 + $0x768] sm:$0xff]
  %v298 = vld [vmem:[%s3 + $0x770] sm:$0xff]
  %v299 = vld [vmem:[%s3 + $0x778] sm:$0xff]
  %v300 = vld [vmem:[%s3 + $0x780] sm:$0xff]
  %v301 = vld [vmem:[%s3 + $0x788] sm:$0xff]
  %v302 = vld [vmem:[%s3 + $0x790] sm:$0xff]
  %v303 = vld [vmem:[%s3 + $0x798] sm:$0xff]
  %v304 = vld [vmem:[%s3 + $0x7a0] sm:$0xff]
  %v305 = vld [vmem:[%s3 + $0x7a8] sm:$0xff]
  %v306 = vld [vmem:[%s3 + $0x7b0] sm:$0xff]
  %v307 = vld [vmem:[%s3 + $0x7b8] sm:$0xff]
  %v308 = vld [vmem:[%s3 + $0x7c0] sm:$0xff]
  %v309 = vld [vmem:[%s3 + $0x7c8] sm:$0xff]
  %v310 = vld [vmem:[%s3 + $0x7d0] sm:$0xff]
  %v311 = vld [vmem:[%s3 + $0x7d8] sm:$0xff]
  %v312 = vld [vmem:[%s3 + $0x7e0] sm:$0xff]
  %v313 = vld [vmem:[%s3 + $0x7e8] sm:$0xff]
  %v314 = vld [vmem:[%s3 + $0x7f0] sm:$0xff]
  %v315 = vld [vmem:[%s3 + $0x7f8] sm:$0xff]
  %v316 = vld [vmem:[%s3 + $0x800] sm:$0xff]
  %v317 = vld [vmem:[%s3 + $0x808] sm:$0xff]
  %v318 = vld [vmem:[%s3 + $0x810] sm:$0xff]
  %v319 = vld [vmem:[%s3 + $0x818] sm:$0xff]
  %v320 = vld [vmem:[%s3 + $0x820] sm:$0xff]
  %v321 = vld [vmem:[%s3 + $0x828] sm:$0xff]
  %v322 = vld [vmem:[%s3 + $0x830] sm:$0xff]
  %v323 = vld [vmem:[%s3 + $0x838] sm:$0xff]
  %v324 = vld [vmem:[%s3 + $0x840] sm:$0xff]
  %v325 = vld [vmem:[%s3 + $0x848] sm:$0xff]
  %v326 = vld [vmem:[%s3 + $0x850] sm:$0xff]
  %v327 = vld [vmem:[%s3 + $0x858] sm:$0xff]
  %v328 = vld [vmem:[%s3 + $0x860] sm:$0xff]
  %v329 = vld [vmem:[%s3 + $0x868] sm:$0xff]
  %v330 = vld [vmem:[%s3 + $0x870] sm:$0xff]
  %v331 = vld [vmem:[%s3 + $0x878] sm:$0xff]
  %332 = vmatprep.subr.mxu0 0.0
  %333 = vmatpush1.msra.mxu0 %v60
  %334 = vmatprep.subr.mxu0 0.0
  %335 = vmatpush1.msra.mxu0 %v61
  %336 = vmatprep.subr.mxu0 0.0
  %337 = vmatpush1.msra.mxu0 %v62
  %338 = vmatprep.subr.mxu0 0.0
  %339 = vmatpush1.msra.mxu0 %v63
  %340 = vmatprep.subr.mxu0 0.0
  %341 = vmatpush1.msra.mxu0 %v64
  %342 = vmatprep.subr.mxu0 0.0
  %343 = vmatpush1.msra.mxu0 %v65
  %344 = vmatprep.subr.mxu0 0.0
  %345 = vmatpush1.msra.mxu0 %v66
  %346 = vmatprep.subr.mxu0 0.0
  %347 = vmatpush1.msra.mxu0 %v67
  %348 = vmatprep.subr.mxu0 0.0
  %349 = vmatpush1.msra.mxu0 %v68
  %350 = vmatprep.subr.mxu0 0.0
  %351 = vmatpush1.msra.mxu0 %v69
  %352 = vmatprep.subr.mxu0 0.0
  %353 = vmatpush1.msra.mxu0 %v70
  %354 = vmatprep.subr.mxu0 0.0
  %355 = vmatpush1.msra.mxu0 %v71
  %356 = vmatprep.subr.mxu0 0.0
  %357 = vmatpush1.msra.mxu0 %v72
  %358 = vmatprep.subr.mxu0 0.0
  %359 = vmatpush1.msra.mxu0 %v73
  %360 = vmatprep.subr.mxu0 0.0
  %361 = vmatpush1.msra.mxu0 %v74
  %362 = vmatprep.subr.mxu0 0.0
  %363 = vmatpush1.msra.mxu0 %v75
  %364 = vmatprep.subr.mxu0 0.0
  %365 = vmatpush1.msra.mxu0 %v76
  %366 = vmatprep.subr.mxu0 0.0
  %367 = vmatpush1.msra.mxu0 %v77
  %368 = vmatprep.subr.mxu0 0.0
  %369 = vmatpush1.msra.mxu0 %v78
  %370 = vmatprep.subr.mxu0 0.0
  %371 = vmatpush1.msra.mxu0 %v79
  %372 = vmatprep.subr.mxu0 0.0
  %373 = vmatpush1.msra.mxu0 %v80
  %374 = vmatprep.subr.mxu0 0.0
  %375 = vmatpush1.msra.mxu0 %v81
  %376 = vmatprep.subr.mxu0 0.0
  %377 = vmatpush1.msra.mxu0 %v82
  %378 = vmatprep.subr.mxu0 0.0
  %379 = vmatpush1.msra.mxu0 %v83
  %380 = vmatprep.subr.mxu0 0.0
  %381 = vmatpush1.msra.mxu0 %v84
  %382 = vmatprep.subr.mxu0 0.0
  %383 = vmatpush1.msra.mxu0 %v85
  %384 = vmatprep.subr.mxu0 0.0
  %385 = vmatpush1.msra.mxu0 %v86
  %386 = vmatprep.subr.mxu0 0.0
  %387 = vmatpush1.msra.mxu0 %v87
  %388 = vmatprep.subr.mxu0 0.0
  %389 = vmatpush1.msra.mxu0 %v88
  %390 = vmatprep.subr.mxu0 0.0
  %391 = vmatpush1.msra.mxu0 %v89
  %392 = vmatprep.subr.mxu0 0.0
  %393 = vmatpush1.msra.mxu0 %v90
  %394 = vmatprep.subr.mxu0 0.0
  %395 = vmatpush1.msra.mxu0 %v91
  %396 = vmatprep.mubr.f32.mxu0 %v44
  %397 = vmatmul.mubr.f32.gmra.mrb[0].mxu0 %v43
  %v398 = vpop.f32.mrb[0].mxu0
  %v399 = vadd.f32 0.0, %v398
  %v400 = vpop.f32.mrb[0].mxu0
  %401 = vdwg.mxu0
  %402 = vmatprep.subr.mxu0 0.0
  %403 = vmatpush1.msra.mxu0 %v92
  %404 = vmatprep.subr.mxu0 0.0
  %405 = vmatpush1.msra.mxu0 %v93
  %406 = vmatprep.subr.mxu0 0.0
  %407 = vmatpush1.msra.mxu0 %v94
  %408 = vmatprep.subr.mxu0 0.0
  %409 = vmatpush1.msra.mxu0 %v95
  %410 = vmatprep.subr.mxu0 0.0
  %411 = vmatpush1.msra.mxu0 %v96
  %412 = vmatprep.subr.mxu0 0.0
  %413 = vmatpush1.msra.mxu0 %v97
  %414 = vmatprep.subr.mxu0 0.0
  %415 = vmatpush1.msra.mxu0 %v98
  %416 = vmatprep.subr.mxu0 0.0
  %417 = vmatpush1.msra.mxu0 %v99
  %418 = vmatprep.subr.mxu0 0.0
  %419 = vmatpush1.msra.mxu0 %v100
  %420 = vmatprep.subr.mxu0 0.0
  %421 = vmatpush1.msra.mxu0 %v101
  %422 = vmatprep.subr.mxu0 0.0
  %423 = vmatpush1.msra.mxu0 %v102
  %424 = vmatprep.subr.mxu0 0.0
  %425 = vmatpush1.msra.mxu0 %v103
  %426 = vmatprep.subr.mxu0 0.0
  %427 = vmatpush1.msra.mxu0 %v104
  %428 = vmatprep.subr.mxu0 0.0
  %429 = vmatpush1.msra.mxu0 %v105
  %430 = vmatprep.subr.mxu0 0.0
  %431 = vmatpush1.msra.mxu0 %v106
  %432 = vmatprep.subr.mxu0 0.0
  %433 = vmatpush1.msra.mxu0 %v107
  %434 = vmatprep.subr.mxu0 0.0
  %435 = vmatpush1.msra.mxu0 %v108
  %436 = vmatprep.subr.mxu0 0.0
  %437 = vmatpush1.msra.mxu0 %v109
  %438 = vmatprep.subr.mxu0 0.0
  %439 = vmatpush1.msra.mxu0 %v110
  %440 = vmatprep.subr.mxu0 0.0
  %441 = vmatpush1.msra.mxu0 %v111
  %442 = vmatprep.subr.mxu0 0.0
  %443 = vmatpush1.msra.mxu0 %v112
  %444 = vmatprep.subr.mxu0 0.0
  %445 = vmatpush1.msra.mxu0 %v113
  %446 = vmatprep.subr.mxu0 0.0
  %447 = vmatpush1.msra.mxu0 %v114
  %448 = vmatprep.subr.mxu0 0.0
  %449 = vmatpush1.msra.mxu0 %v115
  %450 = vmatprep.subr.mxu0 0.0
  %451 = vmatpush1.msra.mxu0 %v116
  %452 = vmatprep.subr.mxu0 0.0
  %453 = vmatpush1.msra.mxu0 %v117
  %454 = vmatprep.subr.mxu0 0.0
  %455 = vmatpush1.msra.mxu0 %v118
  %456 = vmatprep.subr.mxu0 0.0
  %457 = vmatpush1.msra.mxu0 %v119
  %458 = vmatprep.subr.mxu0 0.0
  %459 = vmatpush1.msra.mxu0 %v120
  %460 = vmatprep.subr.mxu0 0.0
  %461 = vmatpush1.msra.mxu0 %v121
  %462 = vmatprep.subr.mxu0 0.0
  %463 = vmatpush1.msra.mxu0 %v122
  %464 = vmatprep.subr.mxu0 0.0
  %465 = vmatpush1.msra.mxu0 %v123
  %466 = vmatprep.mubr.f32.mxu0 %v46
  %467 = vmatmul.mubr.f32.gmra.mrb[0].mxu0 %v45
  %v468 = vpop.f32.mrb[0].mxu0
  %v469 = vadd.f32 %v399, %v468
  %v470 = vpop.f32.mrb[0].mxu0
  %471 = vdwg.mxu0
  %472 = vmatprep.subr.mxu0 0.0
  %473 = vmatpush1.msra.mxu0 %v124
  %474 = vmatprep.subr.mxu0 0.0
  %475 = vmatpush1.msra.mxu0 %v125
  %476 = vmatprep.subr.mxu0 0.0
  %477 = vmatpush1.msra.mxu0 %v126
  %478 = vmatprep.subr.mxu0 0.0
  %479 = vmatpush1.msra.mxu0 %v127
  %480 = vmatprep.subr.mxu0 0.0
  %481 = vmatpush1.msra.mxu0 %v128
  %482 = vmatprep.subr.mxu0 0.0
  %483 = vmatpush1.msra.mxu0 %v129
  %484 = vmatprep.subr.mxu0 0.0
  %485 = vmatpush1.msra.mxu0 %v130
  %486 = vmatprep.subr.mxu0 0.0
  %487 = vmatpush1.msra.mxu0 %v131
  %488 = vmatprep.subr.mxu0 0.0
  %489 = vmatpush1.msra.mxu0 %v132
  %490 = vmatprep.subr.mxu0 0.0
  %491 = vmatpush1.msra.mxu0 %v133
  %492 = vmatprep.subr.mxu0 0.0
  %493 = vmatpush1.msra.mxu0 %v134
  %494 = vmatprep.subr.mxu0 0.0
  %495 = vmatpush1.msra.mxu0 %v135
  %496 = vmatprep.subr.mxu0 0.0
  %497 = vmatpush1.msra.mxu0 %v136
  %498 = vmatprep.subr.mxu0 0.0
  %499 = vmatpush1.msra.mxu0 %v137
  %500 = vmatprep.subr.mxu0 0.0
  %501 = vmatpush1.msra.mxu0 %v138
  %502 = vmatprep.subr.mxu0 0.0
  %503 = vmatpush1.msra.mxu0 %v139
  %504 = vmatprep.subr.mxu0 0.0
  %505 = vmatpush1.msra.mxu0 %v140
  %506 = vmatprep.subr.mxu0 0.0
  %507 = vmatpush1.msra.mxu0 %v141
  %508 = vmatprep.subr.mxu0 0.0
  %509 = vmatpush1.msra.mxu0 %v142
  %510 = vmatprep.subr.mxu0 0.0
  %511 = vmatpush1.msra.mxu0 %v143
  %512 = vmatprep.subr.mxu0 0.0
  %513 = vmatpush1.msra.mxu0 %v144
  %514 = vmatprep.subr.mxu0 0.0
  %515 = vmatpush1.msra.mxu0 %v145
  %516 = vmatprep.subr.mxu0 0.0
  %517 = vmatpush1.msra.mxu0 %v146
  %518 = vmatprep.subr.mxu0 0.0
  %519 = vmatpush1.msra.mxu0 %v147
  %520 = vmatprep.subr.mxu0 0.0
  %521 = vmatpush1.msra.mxu0 %v148
  %522 = vmatprep.subr.mxu0 0.0
  %523 = vmatpush1.msra.mxu0 %v149
  %524 = vmatprep.subr.mxu0 0.0
  %525 = vmatpush1.msra.mxu0 %v150
  %526 = vmatprep.subr.mxu0 0.0
  %527 = vmatpush1.msra.mxu0 %v151
  %528 = vmatprep.subr.mxu0 0.0
  %529 = vmatpush1.msra.mxu0 %v152
  %530 = vmatprep.subr.mxu0 0.0
  %531 = vmatpush1.msra.mxu0 %v153
  %532 = vmatprep.subr.mxu0 0.0
  %533 = vmatpush1.msra.mxu0 %v154
  %534 = vmatprep.subr.mxu0 0.0
  %535 = vmatpush1.msra.mxu0 %v155
  %536 = vmatprep.mubr.f32.mxu0 %v48
  %537 = vmatmul.mubr.f32.gmra.mrb[0].mxu0 %v47
  %v538 = vpop.f32.mrb[0].mxu0
  %v539 = vadd.f32 %v469, %v538
  %v540 = vpop.f32.mrb[0].mxu0
  %541 = vdwg.mxu0
  %542 = vmatprep.subr.mxu0 0.0
  %543 = vmatpush1.msra.mxu0 %v156
  %544 = vmatprep.subr.mxu0 0.0
  %545 = vmatpush1.msra.mxu0 %v157
  %546 = vmatprep.subr.mxu0 0.0
  %547 = vmatpush1.msra.mxu0 %v158
  %548 = vmatprep.subr.mxu0 0.0
  %549 = vmatpush1.msra.mxu0 %v159
  %550 = vmatprep.subr.mxu0 0.0
  %551 = vmatpush1.msra.mxu0 %v160
  %552 = vmatprep.subr.mxu0 0.0
  %553 = vmatpush1.msra.mxu0 %v161
  %554 = vmatprep.subr.mxu0 0.0
  %555 = vmatpush1.msra.mxu0 %v162
  %556 = vmatprep.subr.mxu0 0.0
  %557 = vmatpush1.msra.mxu0 %v163
  %558 = vmatprep.subr.mxu0 0.0
  %559 = vmatpush1.msra.mxu0 %v164
  %560 = vmatprep.subr.mxu0 0.0
  %561 = vmatpush1.msra.mxu0 %v165
  %562 = vmatprep.subr.mxu0 0.0
  %563 = vmatpush1.msra.mxu0 %v166
  %564 = vmatprep.subr.mxu0 0.0
  %565 = vmatpush1.msra.mxu0 %v167
  %566 = vmatprep.subr.mxu0 0.0
  %567 = vmatpush1.msra.mxu0 %v168
  %568 = vmatprep.subr.mxu0 0.0
  %569 = vmatpush1.msra.mxu0 %v169
  %570 = vmatprep.subr.mxu0 0.0
  %571 = vmatpush1.msra.mxu0 %v170
  %572 = vmatprep.subr.mxu0 0.0
  %573 = vmatpush1.msra.mxu0 %v171
  %574 = vmatprep.subr.mxu0 0.0
  %575 = vmatpush1.msra.mxu0 %v172
  %576 = vmatprep.subr.mxu0 0.0
  %577 = vmatpush1.msra.mxu0 %v173
  %578 = vmatprep.subr.mxu0 0.0
  %579 = vmatpush1.msra.mxu0 %v174
  %580 = vmatprep.subr.mxu0 0.0
  %581 = vmatpush1.msra.mxu0 %v175
  %582 = vmatprep.subr.mxu0 0.0
  %583 = vmatpush1.msra.mxu0 %v176
  %584 = vmatprep.subr.mxu0 0.0
  %585 = vmatpush1.msra.mxu0 %v177
  %586 = vmatprep.subr.mxu0 0.0
  %587 = vmatpush1.msra.mxu0 %v178
  %588 = vmatprep.subr.mxu0 0.0
  %589 = vmatpush1.msra.mxu0 %v179
  %590 = vmatprep.subr.mxu0 0.0
  %591 = vmatpush1.msra.mxu0 %v180
  %592 = vmatprep.subr.mxu0 0.0
  %593 = vmatpush1.msra.mxu0 %v181
  %594 = vmatprep.subr.mxu0 0.0
  %595 = vmatpush1.msra.mxu0 %v182
  %596 = vmatprep.subr.mxu0 0.0
  %597 = vmatpush1.msra.mxu0 %v183
  %598 = vmatprep.subr.mxu0 0.0
  %599 = vmatpush1.msra.mxu0 %v184
  %600 = vmatprep.subr.mxu0 0.0
  %601 = vmatpush1.msra.mxu0 %v185
  %602 = vmatprep.subr.mxu0 0.0
  %603 = vmatpush1.msra.mxu0 %v186
  %604 = vmatprep.subr.mxu0 0.0
  %605 = vmatpush1.msra.mxu0 %v187
  %606 = vmatprep.mubr.f32.mxu0 %v50
  %607 = vmatmul.mubr.f32.gmra.mrb[0].mxu0 %v49
  %v608 = vpop.f32.mrb[0].mxu0
  %v609 = vadd.f32 %v539, %v608
  %v610 = vpop.f32.mrb[0].mxu0
  %611 = vdwg.mxu0
  %612 = vmatprep.subr.mxu0 0.0
  %613 = vmatpush1.msra.mxu0 %v188
  %614 = vmatprep.subr.mxu0 0.0
  %615 = vmatpush1.msra.mxu0 %v189
  %616 = vmatprep.subr.mxu0 0.0
  %617 = vmatpush1.msra.mxu0 %v190
  %618 = vmatprep.subr.mxu0 0.0
  %619 = vmatpush1.msra.mxu0 %v191
  %620 = vmatprep.subr.mxu0 0.0
  %621 = vmatpush1.msra.mxu0 %v192
  %622 = vmatprep.subr.mxu0 0.0
  %623 = vmatpush1.msra.mxu0 %v193
  %624 = vmatprep.subr.mxu0 0.0
  %625 = vmatpush1.msra.mxu0 %v194
  %626 = vmatprep.subr.mxu0 0.0
  %627 = vmatpush1.msra.mxu0 %v195
  %628 = vmatprep.subr.mxu0 0.0
  %629 = vmatpush1.msra.mxu0 %v196
  %630 = vmatprep.subr.mxu0 0.0
  %631 = vmatpush1.msra.mxu0 %v197
  %632 = vmatprep.subr.mxu0 0.0
  %633 = vmatpush1.msra.mxu0 %v198
  %634 = vmatprep.subr.mxu0 0.0
  %635 = vmatpush1.msra.mxu0 %v199
  %636 = vmatprep.subr.mxu0 0.0
  %637 = vmatpush1.msra.mxu0 %v200
  %638 = vmatprep.subr.mxu0 0.0
  %639 = vmatpush1.msra.mxu0 %v201
  %640 = vmatprep.subr.mxu0 0.0
  %641 = vmatpush1.msra.mxu0 %v202
  %642 = vmatprep.subr.mxu0 0.0
  %643 = vmatpush1.msra.mxu0 %v203
  %644 = vmatprep.subr.mxu0 0.0
  %645 = vmatpush1.msra.mxu0 %v204
  %646 = vmatprep.subr.mxu0 0.0
  %647 = vmatpush1.msra.mxu0 %v205
  %648 = vmatprep.subr.mxu0 0.0
  %649 = vmatpush1.msra.mxu0 %v206
  %650 = vmatprep.subr.mxu0 0.0
  %651 = vmatpush1.msra.mxu0 %v207
  %652 = vmatprep.subr.mxu0 0.0
  %653 = vmatpush1.msra.mxu0 %v208
  %654 = vmatprep.subr.mxu0 0.0
  %655 = vmatpush1.msra.mxu0 %v209
  %656 = vmatprep.subr.mxu0 0.0
  %657 = vmatpush1.msra.mxu0 %v210
  %658 = vmatprep.subr.mxu0 0.0
  %659 = vmatpush1.msra.mxu0 %v211
  %660 = vmatprep.subr.mxu0 0.0
  %661 = vmatpush1.msra.mxu0 %v212
  %662 = vmatprep.subr.mxu0 0.0
  %663 = vmatpush1.msra.mxu0 %v213
  %664 = vmatprep.subr.mxu0 0.0
  %665 = vmatpush1.msra.mxu0 %v214
  %666 = vmatprep.subr.mxu0 0.0
  %667 = vmatpush1.msra.mxu0 %v215
  %668 = vmatprep.subr.mxu0 0.0
  %669 = vmatpush1.msra.mxu0 %v216
  %670 = vmatprep.subr.mxu0 0.0
  %671 = vmatpush1.msra.mxu0 %v217
  %672 = vmatprep.subr.mxu0 0.0
  %673 = vmatpush1.msra.mxu0 %v218
  %674 = vmatprep.subr.mxu0 0.0
  %675 = vmatpush1.msra.mxu0 %v219
  %676 = vmatprep.mubr.f32.mxu0 %v52
  %677 = vmatmul.mubr.f32.gmra.mrb[0].mxu0 %v51
  %v678 = vpop.f32.mrb[0].mxu0
  %v679 = vadd.f32 %v609, %v678
  %v680 = vpop.f32.mrb[0].mxu0
  %681 = vdwg.mxu0
  %682 = vmatprep.subr.mxu0 0.0
  %683 = vmatpush1.msra.mxu0 %v220
  %684 = vmatprep.subr.mxu0 0.0
  %685 = vmatpush1.msra.mxu0 %v221
  %686 = vmatprep.subr.mxu0 0.0
  %687 = vmatpush1.msra.mxu0 %v222
  %688 = vmatprep.subr.mxu0 0.0
  %689 = vmatpush1.msra.mxu0 %v223
  %690 = vmatprep.subr.mxu0 0.0
  %691 = vmatpush1.msra.mxu0 %v224
  %692 = vmatprep.subr.mxu0 0.0
  %693 = vmatpush1.msra.mxu0 %v225
  %694 = vmatprep.subr.mxu0 0.0
  %695 = vmatpush1.msra.mxu0 %v226
  %696 = vmatprep.subr.mxu0 0.0
  %697 = vmatpush1.msra.mxu0 %v227
  %698 = vmatprep.subr.mxu0 0.0
  %699 = vmatpush1.msra.mxu0 %v228
  %700 = vmatprep.subr.mxu0 0.0
  %701 = vmatpush1.msra.mxu0 %v229
  %702 = vmatprep.subr.mxu0 0.0
  %703 = vmatpush1.msra.mxu0 %v230
  %704 = vmatprep.subr.mxu0 0.0
  %705 = vmatpush1.msra.mxu0 %v231
  %706 = vmatprep.subr.mxu0 0.0
  %707 = vmatpush1.msra.mxu0 %v232
  %708 = vmatprep.subr.mxu0 0.0
  %709 = vmatpush1.msra.mxu0 %v233
  %710 = vmatprep.subr.mxu0 0.0
  %711 = vmatpush1.msra.mxu0 %v234
  %712 = vmatprep.subr.mxu0 0.0
  %713 = vmatpush1.msra.mxu0 %v235
  %714 = vmatprep.subr.mxu0 0.0
  %715 = vmatpush1.msra.mxu0 %v236
  %716 = vmatprep.subr.mxu0 0.0
  %717 = vmatpush1.msra.mxu0 %v237
  %718 = vmatprep.subr.mxu0 0.0
  %719 = vmatpush1.msra.mxu0 %v238
  %720 = vmatprep.subr.mxu0 0.0
  %721 = vmatpush1.msra.mxu0 %v239
  %722 = vmatprep.subr.mxu0 0.0
  %723 = vmatpush1.msra.mxu0 %v240
  %724 = vmatprep.subr.mxu0 0.0
  %725 = vmatpush1.msra.mxu0 %v241
  %726 = vmatprep.subr.mxu0 0.0
  %727 = vmatpush1.msra.mxu0 %v242
  %728 = vmatprep.subr.mxu0 0.0
  %729 = vmatpush1.msra.mxu0 %v243
  %730 = vmatprep.subr.mxu0 0.0
  %731 = vmatpush1.msra.mxu0 %v244
  %732 = vmatprep.subr.mxu0 0.0
  %733 = vmatpush1.msra.mxu0 %v245
  %734 = vmatprep.subr.mxu0 0.0
  %735 = vmatpush1.msra.mxu0 %v246
  %736 = vmatprep.subr.mxu0 0.0
  %737 = vmatpush1.msra.mxu0 %v247
  %738 = vmatprep.subr.mxu0 0.0
  %739 = vmatpush1.msra.mxu0 %v248
  %740 = vmatprep.subr.mxu0 0.0
  %741 = vmatpush1.msra.mxu0 %v249
  %742 = vmatprep.subr.mxu0 0.0
  %743 = vmatpush1.msra.mxu0 %v250
  %744 = vmatprep.subr.mxu0 0.0
  %745 = vmatpush1.msra.mxu0 %v251
  %746 = vmatprep.mubr.f32.mxu0 %v54
  %747 = vmatmul.mubr.f32.gmra.mrb[0].mxu0 %v53
  %v748 = vpop.f32.mrb[0].mxu0
  %v749 = vadd.f32 %v679, %v748
  %v750 = vpop.f32.mrb[0].mxu0
  %751 = vdwg.mxu0
  %752 = vmatprep.subr.mxu0 0.0
  %753 = vmatpush1.msra.mxu0 %v252
  %754 = vmatprep.subr.mxu0 0.0
  %755 = vmatpush1.msra.mxu0 %v253
  %756 = vmatprep.subr.mxu0 0.0
  %757 = vmatpush1.msra.mxu0 %v254
  %758 = vmatprep.subr.mxu0 0.0
  %759 = vmatpush1.msra.mxu0 %v255
  %760 = vmatprep.subr.mxu0 0.0
  %761 = vmatpush1.msra.mxu0 %v256
  %762 = vmatprep.subr.mxu0 0.0
  %763 = vmatpush1.msra.mxu0 %v257
  %764 = vmatprep.subr.mxu0 0.0
  %765 = vmatpush1.msra.mxu0 %v258
  %766 = vmatprep.subr.mxu0 0.0
  %767 = vmatpush1.msra.mxu0 %v259
  %768 = vmatprep.subr.mxu0 0.0
  %769 = vmatpush1.msra.mxu0 %v260
  %770 = vmatprep.subr.mxu0 0.0
  %771 = vmatpush1.msra.mxu0 %v261
  %772 = vmatprep.subr.mxu0 0.0
  %773 = vmatpush1.msra.mxu0 %v262
  %774 = vmatprep.subr.mxu0 0.0
  %775 = vmatpush1.msra.mxu0 %v263
  %776 = vmatprep.subr.mxu0 0.0
  %777 = vmatpush1.msra.mxu0 %v264
  %778 = vmatprep.subr.mxu0 0.0
  %779 = vmatpush1.msra.mxu0 %v265
  %780 = vmatprep.subr.mxu0 0.0
  %781 = vmatpush1.msra.mxu0 %v266
  %782 = vmatprep.subr.mxu0 0.0
  %783 = vmatpush1.msra.mxu0 %v267
  %784 = vmatprep.subr.mxu0 0.0
  %785 = vmatpush1.msra.mxu0 %v268
  %786 = vmatprep.subr.mxu0 0.0
  %787 = vmatpush1.msra.mxu0 %v269
  %788 = vmatprep.subr.mxu0 0.0
  %789 = vmatpush1.msra.mxu0 %v270
  %790 = vmatprep.subr.mxu0 0.0
  %791 = vmatpush1.msra.mxu0 %v271
  %792 = vmatprep.subr.mxu0 0.0
  %793 = vmatpush1.msra.mxu0 %v272
  %794 = vmatprep.subr.mxu0 0.0
  %795 = vmatpush1.msra.mxu0 %v273
  %796 = vmatprep.subr.mxu0 0.0
  %797 = vmatpush1.msra.mxu0 %v274
  %798 = vmatprep.subr.mxu0 0.0
  %799 = vmatpush1.msra.mxu0 %v275
  %800 = vmatprep.subr.mxu0 0.0
  %801 = vmatpush1.msra.mxu0 %v276
  %802 = vmatprep.subr.mxu0 0.0
  %803 = vmatpush1.msra.mxu0 %v277
  %804 = vmatprep.subr.mxu0 0.0
  %805 = vmatpush1.msra.mxu0 %v278
  %806 = vmatprep.subr.mxu0 0.0
  %807 = vmatpush1.msra.mxu0 %v279
  %808 = vmatprep.subr.mxu0 0.0
  %809 = vmatpush1.msra.mxu0 %v280
  %810 = vmatprep.subr.mxu0 0.0
  %811 = vmatpush1.msra.mxu0 %v281
  %812 = vmatprep.subr.mxu0 0.0
  %813 = vmatpush1.msra.mxu0 %v282
  %814 = vmatprep.subr.mxu0 0.0
  %815 = vmatpush1.msra.mxu0 %v283
  %816 = vmatprep.mubr.f32.mxu0 %v56
  %817 = vmatmul.mubr.f32.gmra.mrb[0].mxu0 %v55
  %v818 = vpop.f32.mrb[0].mxu0
  %v819 = vadd.f32 %v749, %v818
  %v820 = vpop.f32.mrb[0].mxu0
  %821 = vdwg.mxu0
  %822 = vmatprep.subr.mxu0 0.0
  %823 = vmatpush1.msra.mxu0 %v284
  %824 = vmatprep.subr.mxu0 0.0
  %825 = vmatpush1.msra.mxu0 %v285
  %826 = vmatprep.subr.mxu0 0.0
  %827 = vmatpush1.msra.mxu0 %v286
  %828 = vmatprep.subr.mxu0 0.0
  %829 = vmatpush1.msra.mxu0 %v287
  %830 = vmatprep.subr.mxu0 0.0
  %831 = vmatpush1.msra.mxu0 %v288
  %832 = vmatprep.subr.mxu0 0.0
  %833 = vmatpush1.msra.mxu0 %v289
  %834 = vmatprep.subr.mxu0 0.0
  %835 = vmatpush1.msra.mxu0 %v290
  %836 = vmatprep.subr.mxu0 0.0
  %837 = vmatpush1.msra.mxu0 %v291
  %838 = vmatprep.subr.mxu0 0.0
  %839 = vmatpush1.msra.mxu0 %v292
  %840 = vmatprep.subr.mxu0 0.0
  %841 = vmatpush1.msra.mxu0 %v293
  %842 = vmatprep.subr.mxu0 0.0
  %843 = vmatpush1.msra.mxu0 %v294
  %844 = vmatprep.subr.mxu0 0.0
  %845 = vmatpush1.msra.mxu0 %v295
  %846 = vmatprep.subr.mxu0 0.0
  %847 = vmatpush1.msra.mxu0 %v296
  %848 = vmatprep.subr.mxu0 0.0
  %849 = vmatpush1.msra.mxu0 %v297
  %850 = vmatprep.subr.mxu0 0.0
  %851 = vmatpush1.msra.mxu0 %v298
  %852 = vmatprep.subr.mxu0 0.0
  %853 = vmatpush1.msra.mxu0 %v299
  %854 = vmatprep.subr.mxu0 0.0
  %855 = vmatpush1.msra.mxu0 %v300
  %856 = vmatprep.subr.mxu0 0.0
  %857 = vmatpush1.msra.mxu0 %v301
  %858 = vmatprep.subr.mxu0 0.0
  %859 = vmatpush1.msra.mxu0 %v302
  %860 = vmatprep.subr.mxu0 0.0
  %861 = vmatpush1.msra.mxu0 %v303
  %862 = vmatprep.subr.mxu0 0.0
  %863 = vmatpush1.msra.mxu0 %v304
  %864 = vmatprep.subr.mxu0 0.0
  %865 = vmatpush1.msra.mxu0 %v305
  %866 = vmatprep.subr.mxu0 0.0
  %867 = vmatpush1.msra.mxu0 %v306
  %868 = vmatprep.subr.mxu0 0.0
  %869 = vmatpush1.msra.mxu0 %v307
  %870 = vmatprep.subr.mxu0 0.0
  %871 = vmatpush1.msra.mxu0 %v308
  %872 = vmatprep.subr.mxu0 0.0
  %873 = vmatpush1.msra.mxu0 %v309
  %874 = vmatprep.subr.mxu0 0.0
  %875 = vmatpush1.msra.mxu0 %v310
  %876 = vmatprep.subr.mxu0 0.0
  %877 = vmatpush1.msra.mxu0 %v311
  %878 = vmatprep.subr.mxu0 0.0
  %879 = vmatpush1.msra.mxu0 %v312
  %880 = vmatprep.subr.mxu0 0.0
  %881 = vmatpush1.msra.mxu0 %v313
  %882 = vmatprep.subr.mxu0 0.0
  %883 = vmatpush1.msra.mxu0 %v314
  %884 = vmatprep.subr.mxu0 0.0
  %885 = vmatpush1.msra.mxu0 %v315
  %886 = vmatprep.mubr.f32.mxu0 %v58
  %887 = vmatmul.mubr.f32.gmra.mrb[0].mxu0 %v57
  %v888 = vpop.f32.mrb[0].mxu0
  %v889 = vadd.f32 %v819, %v888
  %v890 = vpop.f32.mrb[0].mxu0
  %891 = vdwg.mxu0
  %892 = vmatprep.subr.mxu0 0.0
  %893 = vmatpush1.msra.mxu0 %v316
  %894 = vmatprep.subr.mxu0 0.0
  %895 = vmatpush1.msra.mxu0 %v317
  %896 = vmatprep.subr.mxu0 0.0
  %897 = vmatpush1.msra.mxu0 %v318
  %898 = vmatprep.subr.mxu0 0.0
  %899 = vmatpush1.msra.mxu0 %v319
  %900 = vmatprep.subr.mxu0 0.0
  %901 = vmatpush1.msra.mxu0 %v320
  %902 = vmatprep.subr.mxu0 0.0
  %903 = vmatpush1.msra.mxu0 %v321
  %904 = vmatprep.subr.mxu0 0.0
  %905 = vmatpush1.msra.mxu0 %v322
  %906 = vmatprep.subr.mxu0 0.0
  %907 = vmatpush1.msra.mxu0 %v323
  %908 = vmatprep.subr.mxu0 0.0
  %909 = vmatpush1.msra.mxu0 %v324
  %910 = vmatprep.subr.mxu0 0.0
  %911 = vmatpush1.msra.mxu0 %v325
  %912 = vmatprep.subr.mxu0 0.0
  %913 = vmatpush1.msra.mxu0 %v326
  %914 = vmatprep.subr.mxu0 0.0
  %915 = vmatpush1.msra.mxu0 %v327
  %916 = vmatprep.subr.mxu0 0.0
  %917 = vmatpush1.msra.mxu0 %v328
  %918 = vmatprep.subr.mxu0 0.0
  %919 = vmatpush1.msra.mxu0 %v329
  %920 = vmatprep.subr.mxu0 0.0
  %921 = vmatpush1.msra.mxu0 %v330
  %922 = vmatprep.subr.mxu0 0.0
  %923 = vmatpush1.msra.mxu0 %v331
  %924 = vmatprep.subr.mxu0 0.0
  %925 = vmatpush1.msra.mxu0 0.0
  %926 = vmatprep.subr.mxu0 0.0
  %927 = vmatpush1.msra.mxu0 0.0
  %928 = vmatprep.subr.mxu0 0.0
  %929 = vmatpush1.msra.mxu0 0.0
  %930 = vmatprep.subr.mxu0 0.0
  %931 = vmatpush1.msra.mxu0 0.0
  %932 = vmatprep.subr.mxu0 0.0
  %933 = vmatpush1.msra.mxu0 0.0
  %934 = vmatprep.subr.mxu0 0.0
  %935 = vmatpush1.msra.mxu0 0.0
  %936 = vmatprep.subr.mxu0 0.0
  %937 = vmatpush1.msra.mxu0 0.0
  %938 = vmatprep.subr.mxu0 0.0
  %939 = vmatpush1.msra.mxu0 0.0
  %940 = vmatprep.subr.mxu0 0.0
  %941 = vmatpush1.msra.mxu0 0.0
  %942 = vmatprep.subr.mxu0 0.0
  %943 = vmatpush1.msra.mxu0 0.0
  %944 = vmatprep.subr.mxu0 0.0
  %945 = vmatpush1.msra.mxu0 0.0
  %946 = vmatprep.subr.mxu0 0.0
  %947 = vmatpush1.msra.mxu0 0.0
  %948 = vmatprep.subr.mxu0 0.0
  %949 = vmatpush1.msra.mxu0 0.0
  %950 = vmatprep.subr.mxu0 0.0
  %951 = vmatpush1.msra.mxu0 0.0
  %952 = vmatprep.subr.mxu0 0.0
  %953 = vmatpush1.msra.mxu0 0.0
  %954 = vmatprep.subr.mxu0 0.0
  %955 = vmatpush1.msra.mxu0 0.0
  %956 = vmatprep.mubr.f32.mxu0 0.0
  %957 = vmatmul.mubr.f32.gmra.mrb[0].mxu0 %v59
  %v958 = vpop.f32.mrb[0].mxu0
  %v959 = vadd.f32 %v889, %v958
  %v960 = vpop.f32.mrb[0].mxu0
  %961 = vdwg.mxu0
  %962 = vmatprep.subr.mxu0 0.0
  %963 = vmatpush1.msra.mxu0 %v27
  %964 = vmatprep.subr.mxu0 0.0
  %965 = vmatpush1.msra.mxu0 %v28
  %966 = vmatprep.subr.mxu0 0.0
  %967 = vmatpush1.msra.mxu0 %v29
  %968 = vmatprep.subr.mxu0 0.0
  %969 = vmatpush1.msra.mxu0 %v30
  %970 = vmatprep.subr.mxu0 0.0
  %971 = vmatpush1.msra.mxu0 %v31
  %972 = vmatprep.subr.mxu0 0.0
  %973 = vmatpush1.msra.mxu0 %v32
  %974 = vmatprep.subr.mxu0 0.0
  %975 = vmatpush1.msra.mxu0 %v33
  %976 = vmatprep.subr.mxu0 0.0
  %977 = vmatpush1.msra.mxu0 %v34
  %978 = vmatprep.subr.mxu0 0.0
  %979 = vmatpush1.msra.mxu0 %v35
  %980 = vmatprep.subr.mxu0 0.0
  %981 = vmatpush1.msra.mxu0 %v36
  %982 = vmatprep.subr.mxu0 0.0
  %983 = vmatpush1.msra.mxu0 %v37
  %984 = vmatprep.subr.mxu0 0.0
  %985 = vmatpush1.msra.mxu0 %v38
  %986 = vmatprep.subr.mxu0 0.0
  %987 = vmatpush1.msra.mxu0 %v39
  %988 = vmatprep.subr.mxu0 0.0
  %989 = vmatpush1.msra.mxu0 %v40
  %990 = vmatprep.subr.mxu0 0.0
  %991 = vmatpush1.msra.mxu0 %v41
  %992 = vmatprep.subr.mxu0 0.0
  %993 = vmatpush1.msra.mxu0 %v42
  %994 = vmatprep.subr.mxu0 0.0
  %995 = vmatpush1.msra.mxu0 0.0
  %996 = vmatprep.subr.mxu0 0.0
  %997 = vmatpush1.msra.mxu0 0.0
  %998 = vmatprep.subr.mxu0 0.0
  %999 = vmatpush1.msra.mxu0 0.0
  %1000 = vmatprep.subr.mxu0 0.0
  %1001 = vmatpush1.msra.mxu0 0.0
  %1002 = vmatprep.subr.mxu0 0.0
  %1003 = vmatpush1.msra.mxu0 0.0
  %1004 = vmatprep.subr.mxu0 0.0
  %1005 = vmatpush1.msra.mxu0 0.0
  %1006 = vmatprep.subr.mxu0 0.0
  %1007 = vmatpush1.msra.mxu0 0.0
  %1008 = vmatprep.subr.mxu0 0.0
  %1009 = vmatpush1.msra.mxu0 0.0
  %1010 = vmatprep.subr.mxu0 0.0
  %1011 = vmatpush1.msra.mxu0 0.0
  %1012 = vmatprep.subr.mxu0 0.0
  %1013 = vmatpush1.msra.mxu0 0.0
  %1014 = vmatprep.subr.mxu0 0.0
  %1015 = vmatpush1.msra.mxu0 0.0
  %1016 = vmatprep.subr.mxu0 0.0
  %1017 = vmatpush1.msra.mxu0 0.0
  %1018 = vmatprep.subr.mxu0 0.0
  %1019 = vmatpush1.msra.mxu0 0.0
  %1020 = vmatprep.subr.mxu0 0.0
  %1021 = vmatpush1.msra.mxu0 0.0
  %1022 = vmatprep.subr.mxu0 0.0
  %1023 = vmatpush1.msra.mxu0 0.0
  %1024 = vmatprep.subr.mxu0 0.0
  %1025 = vmatpush1.msra.mxu0 0.0
  %1026 = vmatprep.mubr.f32.mxu0 0.0
  %1027 = vmatmul.mubr.f32.gmra.mrb[0].mxu0 %v26
  %v1028 = vpop.f32.mrb[0].mxu0
  %v1029 = vadd.f32 %v959, %v1028
  %v1030 = vpop.f32.mrb[0].mxu0
  %1031 = vdwg.mxu0
  %v1032 = vld [vmem:[%s4] sm:$0x1]
  %v1034 = vlaneseq
  %v1035 = vshrl.u32 %v1034, 7
  %v1036 = vsub.s32 0, %v1035
  %v1037 = vrot.slane %v1032, %v1036
  %v1039 = vadd.f32 %v1029, %v1037
  %v1040 = vmax.f32 %v1039, 0.0
  %v1041 = vld [vmem:[%s5] sm:$0xff]
  %v1042 = vld [vmem:[%s5 + $0x8] sm:$0xff]
  %v1043 = vld [vmem:[%s5 + $0x10] sm:$0xff]
  %v1044 = vld [vmem:[%s5 + $0x18] sm:$0xff]
  %v1045 = vld [vmem:[%s5 + $0x20] sm:$0xff]
  %v1046 = vld [vmem:[%s5 + $0x28] sm:$0xff]
  %v1047 = vld [vmem:[%s5 + $0x30] sm:$0xff]
  %v1048 = vld [vmem:[%s5 + $0x38] sm:$0xff]
  %v1049 = vld [vmem:[%s5 + $0x40] sm:$0xff]
  %v1050 = vld [vmem:[%s5 + $0x48] sm:$0xff]
  %v1051 = vld [vmem:[%s5 + $0x50] sm:$0xff]
  %v1052 = vld [vmem:[%s5 + $0x58] sm:$0xff]
  %v1053 = vld [vmem:[%s5 + $0x60] sm:$0xff]
  %v1054 = vld [vmem:[%s5 + $0x68] sm:$0xff]
  %v1055 = vld [vmem:[%s5 + $0x70] sm:$0xff]
  %v1056 = vld [vmem:[%s5 + $0x78] sm:$0xff]
  %v1057 = vld [vmem:[%s6] sm:$0x1]
  %v1059 = vlaneseq
  %v1060 = vshrl.u32 %v1059, 7
  %v1061 = vsub.s32 0, %v1060
  %v1062 = vrot.slane %v1057, %v1061
  %1064 = vmatprep.subr.mxu0 0.0
  %1065 = vmatpush1.msra.mxu0 %v1041
  %1066 = vmatprep.subr.mxu0 0.0
  %1067 = vmatpush1.msra.mxu0 %v1042
  %1068 = vmatprep.subr.mxu0 0.0
  %1069 = vmatpush1.msra.mxu0 %v1043
  %1070 = vmatprep.subr.mxu0 0.0
  %1071 = vmatpush1.msra.mxu0 %v1044
  %1072 = vmatprep.subr.mxu0 0.0
  %1073 = vmatpush1.msra.mxu0 %v1045
  %1074 = vmatprep.subr.mxu0 0.0
  %1075 = vmatpush1.msra.mxu0 %v1046
  %1076 = vmatprep.subr.mxu0 0.0
  %1077 = vmatpush1.msra.mxu0 %v1047
  %1078 = vmatprep.subr.mxu0 0.0
  %1079 = vmatpush1.msra.mxu0 %v1048
  %1080 = vmatprep.subr.mxu0 0.0
  %1081 = vmatpush1.msra.mxu0 %v1049
  %1082 = vmatprep.subr.mxu0 0.0
  %1083 = vmatpush1.msra.mxu0 %v1050
  %1084 = vmatprep.subr.mxu0 0.0
  %1085 = vmatpush1.msra.mxu0 %v1051
  %1086 = vmatprep.subr.mxu0 0.0
  %1087 = vmatpush1.msra.mxu0 %v1052
  %1088 = vmatprep.subr.mxu0 0.0
  %1089 = vmatpush1.msra.mxu0 %v1053
  %1090 = vmatprep.subr.mxu0 0.0
  %1091 = vmatpush1.msra.mxu0 %v1054
  %1092 = vmatprep.subr.mxu0 0.0
  %1093 = vmatpush1.msra.mxu0 %v1055
  %1094 = vmatprep.subr.mxu0 0.0
  %1095 = vmatpush1.msra.mxu0 %v1056
  %1096 = vmatprep.subr.mxu0 0.0
  %1097 = vmatpush1.msra.mxu0 0.0
  %1098 = vmatprep.subr.mxu0 0.0
  %1099 = vmatpush1.msra.mxu0 0.0
  %1100 = vmatprep.subr.mxu0 0.0
  %1101 = vmatpush1.msra.mxu0 0.0
  %1102 = vmatprep.subr.mxu0 0.0
  %1103 = vmatpush1.msra.mxu0 0.0
  %1104 = vmatprep.subr.mxu0 0.0
  %1105 = vmatpush1.msra.mxu0 0.0
  %1106 = vmatprep.subr.mxu0 0.0
  %1107 = vmatpush1.msra.mxu0 0.0
  %1108 = vmatprep.subr.mxu0 0.0
  %1109 = vmatpush1.msra.mxu0 0.0
  %1110 = vmatprep.subr.mxu0 0.0
  %1111 = vmatpush1.msra.mxu0 0.0
  %1112 = vmatprep.subr.mxu0 0.0
  %1113 = vmatpush1.msra.mxu0 0.0
  %1114 = vmatprep.subr.mxu0 0.0
  %1115 = vmatpush1.msra.mxu0 0.0
  %1116 = vmatprep.subr.mxu0 0.0
  %1117 = vmatpush1.msra.mxu0 0.0
  %1118 = vmatprep.subr.mxu0 0.0
  %1119 = vmatpush1.msra.mxu0 0.0
  %1120 = vmatprep.subr.mxu0 0.0
  %1121 = vmatpush1.msra.mxu0 0.0
  %1122 = vmatprep.subr.mxu0 0.0
  %1123 = vmatpush1.msra.mxu0 0.0
  %1124 = vmatprep.subr.mxu0 0.0
  %1125 = vmatpush1.msra.mxu0 0.0
  %1126 = vmatprep.subr.mxu0 0.0
  %1127 = vmatpush1.msra.mxu0 0.0
  %1128 = vmatprep.mubr.f32.mxu0 0.0
  %1129 = vmatmul.mubr.f32.gmra.mrb[0].mxu0 %v1040
  %v1130 = vpop.f32.mrb[0].mxu0
  %v1131 = vadd.f32 %v1062, %v1130
  %v1132 = vpop.f32.mrb[0].mxu0
  %1133 = vdwg.mxu0
  %1134 = vst [vmem:[%s7] sm:$0xff] %v1131
  // Predicated region
  $region30: #{ptgcn_forward.3} parent=0 // pred_check
    _
  $region31: #{ptgcn_forward.3} parent=0 // pred_check_branch
    %1136 = sbr.rel (0) target = $region33
  $region32: #{ptgcn_forward.3} parent=0 // pred_region
    _
  $region33: #{ptgcn_forward.3} parent=0 // pred_fallthru
    _
  // Predicated region
  $region34: #{ptgcn_forward.3} parent=0 // pred_check
    _
  $region35: #{ptgcn_forward.3} parent=0 // pred_check_branch
    %1138 = sbr.rel (0) target = $region37
  $region36: #{ptgcn_forward.3} parent=0 // pred_region
    _
  $region37: #{ptgcn_forward.3} parent=0 // pred_fallthru
    _

</llo_original>
